<compile_context>
chip_gen: v5e
topology: v5e:2x2
jax: 0.10.0
libtpu: 0.0.40
codegen_flags: <defaults>
</compile_context>

<pallas_src>
import functools
import math

import jax
import jax.numpy as jnp
from jax import lax
from jax.experimental import pallas as pl
from jax.experimental.pallas import tpu as pltpu


def _round_up(x, m):
    return ((x + m - 1) // m) * m


def _flash_causal_kernel(xq_ref, xkv_ref, wq_ref, wk_ref, wv_ref, o_ref,
                         q_scr, m_scr, l_scr, acc_scr, *, scale, tq, tk):
    """One (batch, q-tile, kv-tile) grid step of causal attention.

    xq_ref : (tq, d_in_p)       x rows for this query tile       (compute dtype)
    xkv_ref: (tk, d_in_p)       x rows for this key/value tile   (compute dtype)
    w*_ref : (d_in_p, d_out_p)  pre-transposed projection weights (compute dtype)
    o_ref  : (tq, d_out_p)      output tile                       (output dtype)
    q_scr  : (tq, d_out_p)      scaled query tile, resident across the kv axis
    m_scr, l_scr : (tq, 1) f32  online-softmax running max / denominator
    acc_scr: (tq, d_out_p) f32  un-normalized context accumulator
    """
    qi = pl.program_id(1)
    ki = pl.program_id(2)

    dn_proj = (((1,), (0,)), ((), ()))   # (rows, d_in) x (d_in, d_out)
    dn_qk = (((1,), (1,)), ((), ()))     # (tq, d) x (tk, d) -> (tq, tk), no transpose

    @pl.when(ki == 0)
    def _init():
        q = lax.dot_general(xq_ref[...], wq_ref[...], dn_proj,
                            preferred_element_type=jnp.float32)
        # Fold the 1/sqrt(d_out) softmax scale into q: O(tq*d) instead of O(tq*tk).
        q_scr[...] = (q * scale).astype(q_scr.dtype)
        m_scr[...] = jnp.full_like(m_scr, -jnp.inf)
        l_scr[...] = jnp.zeros_like(l_scr)
        acc_scr[...] = jnp.zeros_like(acc_scr)

    # kv tiles strictly above the causal diagonal contribute nothing: skip compute.
    q_last_row = (qi + 1) * tq - 1
    kv_first_col = ki * tk

    @pl.when(kv_first_col <= q_last_row)
    def _update():
        xkv = xkv_ref[...]
        k = lax.dot_general(xkv, wk_ref[...], dn_proj,
                            preferred_element_type=jnp.float32).astype(q_scr.dtype)
        v = lax.dot_general(xkv, wv_ref[...], dn_proj,
                            preferred_element_type=jnp.float32).astype(q_scr.dtype)

        s = lax.dot_general(q_scr[...], k, dn_qk,
                            preferred_element_type=jnp.float32)        # (tq, tk) f32

        # Tile-local causal mask built from global row/col offsets.
        row = qi * tq + lax.broadcasted_iota(jnp.int32, (tq, tk), 0)
        col = kv_first_col + lax.broadcasted_iota(jnp.int32, (tq, tk), 1)
        s = jnp.where(col > row, -jnp.inf, s)

        m_prev = m_scr[...]
        m_new = jnp.maximum(m_prev, jnp.max(s, axis=-1, keepdims=True))
        alpha = jnp.exp(m_prev - m_new)
        p = jnp.exp(s - m_new)
        l_scr[...] = alpha * l_scr[...] + jnp.sum(p, axis=-1, keepdims=True)
        acc_scr[...] = alpha * acc_scr[...] + jnp.dot(
            p.astype(q_scr.dtype), v, preferred_element_type=jnp.float32)
        m_scr[...] = m_new

    @pl.when(ki == pl.num_programs(2) - 1)
    def _finalize():
        # Deferred normalization; reciprocal runs on the EUP slot.
        inv_l = pl.reciprocal(l_scr[...], approx=True)
        o_ref[...] = (acc_scr[...] * inv_l).astype(o_ref.dtype)
        # TODO(synk): dropout(p>0, training) on attn_weights would need
        # pltpu.prng_seed / prng_random_bits here; the module is exercised with
        # p=0.0 (identity), which is what this kernel implements.


def causal_attention(x, w_query, w_key, w_value, *, tq=128, tk=128,
                     compute_dtype=None):
    """CausalAttention forward.

    x: (b, T, d_in); weights PyTorch-style (d_out, d_in). Returns (b, T, d_out)
    in x.dtype. compute_dtype (e.g. jnp.bfloat16) sets the MXU operand dtype;
    softmax statistics and the accumulator always stay in f32.
    """
    b, T, d_in = x.shape
    d_out = w_query.shape[0]
    out_dtype = x.dtype
    if compute_dtype is None:
        compute_dtype = x.dtype

    scale = 1.0 / math.sqrt(d_out)            # keys.shape[-1] ** 0.5

    # Pad to lane/sublane-friendly shapes: last dims multiples of 128 (lane-dense
    # loads/stores, full MXU columns); sequence padded to the tile size. Padded
    # kv rows are always above the causal diagonal of real queries, so they are
    # masked out; padded query rows are sliced off below.
    d_in_p = _round_up(d_in, 128)
    d_out_p = _round_up(d_out, 128)
    t_lcm = tq * tk // math.gcd(tq, tk)
    T_p = _round_up(T, t_lcm)

    x_p = jnp.pad(x, ((0, 0), (0, T_p - T), (0, d_in_p - d_in))).astype(compute_dtype)

    def prep_w(w):   # (d_out, d_in) -> (d_in_p, d_out_p), transposed/padded/cast once
        wt = jnp.pad(w.T, ((0, d_in_p - d_in), (0, d_out_p - d_out)))
        return wt.astype(compute_dtype)

    wq_t, wk_t, wv_t = prep_w(w_query), prep_w(w_key), prep_w(w_value)

    n_q = T_p // tq
    n_kv = T_p // tk

    kernel = functools.partial(_flash_causal_kernel, scale=scale, tq=tq, tk=tk)

    grid_spec = pltpu.PrefetchScalarGridSpec(
        num_scalar_prefetch=0,
        grid=(b, n_q, n_kv),
        in_specs=[
            # x rows for the query tile
            pl.BlockSpec((pl.Squeezed(), tq, d_in_p), lambda bi, qi, ki: (bi, qi, 0)),
            # x rows for the key/value tile
            pl.BlockSpec((pl.Squeezed(), tk, d_in_p), lambda bi, qi, ki: (bi, ki, 0)),
            # projection weights (constant block -> stay resident in VMEM)
            pl.BlockSpec((d_in_p, d_out_p), lambda bi, qi, ki: (0, 0)),
            pl.BlockSpec((d_in_p, d_out_p), lambda bi, qi, ki: (0, 0)),
            pl.BlockSpec((d_in_p, d_out_p), lambda bi, qi, ki: (0, 0)),
        ],
        out_specs=pl.BlockSpec((pl.Squeezed(), tq, d_out_p),
                               lambda bi, qi, ki: (bi, qi, 0)),
        scratch_shapes=[
            pltpu.VMEM((tq, d_out_p), compute_dtype),   # scaled q tile
            pltpu.VMEM((tq, 1), jnp.float32),           # running max m
            pltpu.VMEM((tq, 1), jnp.float32),           # running denominator l
            pltpu.VMEM((tq, d_out_p), jnp.float32),     # context accumulator
        ],
    )

    out_p = pl.pallas_call(
        kernel,
        out_shape=jax.ShapeDtypeStruct((b, T_p, d_out_p), out_dtype),
        grid_spec=grid_spec,
        compiler_params=pltpu.CompilerParams(
            dimension_semantics=("parallel", "parallel", "arbitrary")),
    )(x_p, x_p, wq_t, wk_t, wv_t)

    return out_p[:, :T, :d_out]


def causal_attention_ref(x, w_query, w_key, w_value):
    """Pure-JAX reference mirroring the PyTorch forward (dropout p=0)."""
    q = x @ w_query.T
    k = x @ w_key.T
    v = x @ w_value.T
    scores = q @ jnp.swapaxes(k, 1, 2)
    T = x.shape[1]
    mask = jnp.triu(jnp.ones((T, T), dtype=bool), k=1)
    scores = jnp.where(mask[None, :, :], -jnp.inf, scores)
    w = jax.nn.softmax(scores / math.sqrt(k.shape[-1]), axis=-1)
    return w @ v


if __name__ == "__main__":
    # --- Book demo shapes: batch of two copies of the (6, 3) token matrix. ---
    inputs = jnp.array(
        [[0.43, 0.15, 0.89],
         [0.55, 0.87, 0.66],
         [0.57, 0.85, 0.64],
         [0.22, 0.58, 0.33],
         [0.77, 0.25, 0.10],
         [0.05, 0.80, 0.55]], dtype=jnp.float32)
    batch = jnp.stack([inputs, inputs], axis=0)          # (2, 6, 3)

    d_in = inputs.shape[1]   # 3
    d_out = 2

    key = jax.random.PRNGKey(0)
    kq, kk, kv, kx, kw = jax.random.split(key, 5)
    bound = 1.0 / math.sqrt(d_in)
    w_query = jax.random.uniform(kq, (d_out, d_in), jnp.float32, -bound, bound)
    w_key = jax.random.uniform(kk, (d_out, d_in), jnp.float32, -bound, bound)
    w_value = jax.random.uniform(kv, (d_out, d_in), jnp.float32, -bound, bound)

    out = jax.block_until_ready(causal_attention(batch, w_query, w_key, w_value))
    ref = causal_attention_ref(batch, w_query, w_key, w_value)
    assert out.shape == (2, batch.shape[1], d_out)
    assert jnp.allclose(out, ref, atol=2e-2, rtol=2e-2)

    # --- Larger tiled check: multiple q/kv tiles, exercises the causal skip. ---
    b2, T2, din2, dout2 = 2, 256, 64, 64
    x2 = jax.random.normal(kx, (b2, T2, din2), jnp.float32)
    kq2, kk2, kv2 = jax.random.split(kw, 3)
    bound2 = 1.0 / math.sqrt(din2)
    wq2 = jax.random.uniform(kq2, (dout2, din2), jnp.float32, -bound2, bound2)
    wk2 = jax.random.uniform(kk2, (dout2, din2), jnp.float32, -bound2, bound2)
    wv2 = jax.random.uniform(kv2, (dout2, din2), jnp.float32, -bound2, bound2)

    out2 = jax.block_until_ready(causal_attention(x2, wq2, wk2, wv2))
    ref2 = causal_attention_ref(x2, wq2, wk2, wv2)
    assert out2.shape == (b2, T2, dout2)
    assert jnp.allclose(out2, ref2, atol=2e-2, rtol=2e-2)

    # --- bf16 MXU operands with f32 softmax/accumulation. ---
    out3 = jax.block_until_ready(
        causal_attention(x2, wq2, wk2, wv2, compute_dtype=jnp.bfloat16))
    assert jnp.allclose(out3, ref2, atol=1e-1, rtol=1e-1)

    print("KERNEL_OK")
</pallas_src>

<mosaic_0001>
module attributes {stable_mosaic.version = 11 : i64} {
  func.func @_flash_causal_kernel(%arg0: i32, %arg1: i32, %arg2: i32, %arg3: memref<1x128x128xf32, #tpu.memory_space<vmem>>, %arg4: memref<1x128x128xf32, #tpu.memory_space<vmem>>, %arg5: memref<128x128xf32, #tpu.memory_space<vmem>>, %arg6: memref<128x128xf32, #tpu.memory_space<vmem>>, %arg7: memref<128x128xf32, #tpu.memory_space<vmem>>, %arg8: memref<1x128x128xf32, #tpu.memory_space<vmem>>, %arg9: memref<128x128xf32, #tpu.memory_space<vmem>>, %arg10: memref<128x1xf32, #tpu.memory_space<vmem>>, %arg11: memref<128x1xf32, #tpu.memory_space<vmem>>, %arg12: memref<128x128xf32, #tpu.memory_space<vmem>>) attributes {dimension_semantics = [#tpu.dimension_semantics<parallel>, #tpu.dimension_semantics<parallel>, #tpu.dimension_semantics<arbitrary>], iteration_bounds = array<i64: 2, 1, 1>, scalar_prefetch = 0 : i64, scratch_operands = 4 : i64, tpu.core_type = #tpu.core_type<tc>, window_params = [{transform_indices = @transform_0, window_bounds = array<i64: 1, 128, 128>}, {transform_indices = @transform_1, window_bounds = array<i64: 1, 128, 128>}, {pipeline_mode = #tpu.pipeline_mode<synchronous>, transform_indices = @transform_2, window_bounds = array<i64: 128, 128>}, {pipeline_mode = #tpu.pipeline_mode<synchronous>, transform_indices = @transform_3, window_bounds = array<i64: 128, 128>}, {pipeline_mode = #tpu.pipeline_mode<synchronous>, transform_indices = @transform_4, window_bounds = array<i64: 128, 128>}, {transform_indices = @transform_5, window_bounds = array<i64: 1, 128, 128>}]} {
    %c0_i32 = arith.constant 0 : i32
    %0 = arith.cmpi eq, %arg2, %c0_i32 : i32
    %1 = arith.extui %0 : i1 to i32
    %c0_i32_0 = arith.constant 0 : i32
    %2 = arith.cmpi ne, %1, %c0_i32_0 : i32
    scf.if %2 {
      %c0 = arith.constant 0 : index
      %c0_6 = arith.constant 0 : index
      %c0_7 = arith.constant 0 : index
      %13 = vector.load %arg3[%c0, %c0_6, %c0_7] : memref<1x128x128xf32, #tpu.memory_space<vmem>>, vector<1x128x128xf32>
      %14 = vector.shape_cast %13 : vector<1x128x128xf32> to vector<128x128xf32>
      %c0_8 = arith.constant 0 : index
      %c0_9 = arith.constant 0 : index
      %15 = vector.load %arg5[%c0_8, %c0_9] : memref<128x128xf32, #tpu.memory_space<vmem>>, vector<128x128xf32>
      %cst = arith.constant dense<0.000000e+00> : vector<128x128xf32>
      %16 = tpu.matmul %14, %15, %cst {dimension_numbers = #tpu.dot_dimension_numbers<[1], [0], [0], [1], [0, 0, 1, 1], [], []>} : vector<128x128xf32>, vector<128x128xf32>, vector<128x128xf32> -> vector<128x128xf32>
      %cst_10 = arith.constant 0.707106769 : f32
      %17 = vector.broadcast %cst_10 : f32 to vector<128x128xf32>
      %18 = arith.mulf %16, %17 : vector<128x128xf32>
      %c0_11 = arith.constant 0 : index
      %c0_12 = arith.constant 0 : index
      %19 = vector.load %arg9[%c0_11, %c0_12] : memref<128x128xf32, #tpu.memory_space<vmem>>, vector<128x128xf32>
      tpu.vector_store %arg9[%c0_11, %c0_12], %18 {strides = array<i32>} : memref<128x128xf32, #tpu.memory_space<vmem>>, vector<128x128xf32>,
      %cst_13 = arith.constant 0xFF800000 : f32
      %20 = vector.broadcast %cst_13 : f32 to vector<128x1xf32>
      %c0_14 = arith.constant 0 : index
      %c0_15 = arith.constant 0 : index
      %21 = vector.load %arg10[%c0_14, %c0_15] : memref<128x1xf32, #tpu.memory_space<vmem>>, vector<128x1xf32>
      tpu.vector_store %arg10[%c0_14, %c0_15], %20 {strides = array<i32>} : memref<128x1xf32, #tpu.memory_space<vmem>>, vector<128x1xf32>,
      %cst_16 = arith.constant 0.000000e+00 : f32
      %22 = vector.broadcast %cst_16 : f32 to vector<128x1xf32>
      %c0_17 = arith.constant 0 : index
      %c0_18 = arith.constant 0 : index
      %23 = vector.load %arg11[%c0_17, %c0_18] : memref<128x1xf32, #tpu.memory_space<vmem>>, vector<128x1xf32>
      tpu.vector_store %arg11[%c0_17, %c0_18], %22 {strides = array<i32>} : memref<128x1xf32, #tpu.memory_space<vmem>>, vector<128x1xf32>,
      %cst_19 = arith.constant 0.000000e+00 : f32
      %24 = vector.broadcast %cst_19 : f32 to vector<128x128xf32>
      %c0_20 = arith.constant 0 : index
      %c0_21 = arith.constant 0 : index
      %25 = vector.load %arg12[%c0_20, %c0_21] : memref<128x128xf32, #tpu.memory_space<vmem>>, vector<128x128xf32>
      tpu.vector_store %arg12[%c0_20, %c0_21], %24 {strides = array<i32>} : memref<128x128xf32, #tpu.memory_space<vmem>>, vector<128x128xf32>,
    } else {
    }
    %c1_i32 = arith.constant 1 : i32
    %3 = arith.addi %arg1, %c1_i32 : i32
    %c128_i32 = arith.constant 128 : i32
    %4 = arith.muli %3, %c128_i32 : i32
    %c1_i32_1 = arith.constant 1 : i32
    %5 = arith.subi %4, %c1_i32_1 : i32
    %c128_i32_2 = arith.constant 128 : i32
    %6 = arith.muli %arg2, %c128_i32_2 : i32
    %7 = arith.cmpi sle, %6, %5 : i32
    %8 = arith.extui %7 : i1 to i32
    %c0_i32_3 = arith.constant 0 : i32
    %9 = arith.cmpi ne, %8, %c0_i32_3 : i32
    scf.if %9 {
      %c0 = arith.constant 0 : index
      %c0_6 = arith.constant 0 : index
      %c0_7 = arith.constant 0 : index
      %13 = vector.load %arg4[%c0, %c0_6, %c0_7] : memref<1x128x128xf32, #tpu.memory_space<vmem>>, vector<1x128x128xf32>
      %14 = vector.shape_cast %13 : vector<1x128x128xf32> to vector<128x128xf32>
      %c0_8 = arith.constant 0 : index
      %c0_9 = arith.constant 0 : index
      %15 = vector.load %arg6[%c0_8, %c0_9] : memref<128x128xf32, #tpu.memory_space<vmem>>, vector<128x128xf32>
      %cst = arith.constant dense<0.000000e+00> : vector<128x128xf32>
      %16 = tpu.matmul %14, %15, %cst {dimension_numbers = #tpu.dot_dimension_numbers<[1], [0], [0], [1], [0, 0, 1, 1], [], []>} : vector<128x128xf32>, vector<128x128xf32>, vector<128x128xf32> -> vector<128x128xf32>
      %c0_10 = arith.constant 0 : index
      %c0_11 = arith.constant 0 : index
      %17 = vector.load %arg7[%c0_10, %c0_11] : memref<128x128xf32, #tpu.memory_space<vmem>>, vector<128x128xf32>
      %cst_12 = arith.constant dense<0.000000e+00> : vector<128x128xf32>
      %18 = tpu.matmul %14, %17, %cst_12 {dimension_numbers = #tpu.dot_dimension_numbers<[1], [0], [0], [1], [0, 0, 1, 1], [], []>} : vector<128x128xf32>, vector<128x128xf32>, vector<128x128xf32> -> vector<128x128xf32>
      %c0_13 = arith.constant 0 : index
      %c0_14 = arith.constant 0 : index
      %19 = vector.load %arg9[%c0_13, %c0_14] : memref<128x128xf32, #tpu.memory_space<vmem>>, vector<128x128xf32>
      %cst_15 = arith.constant dense<0.000000e+00> : vector<128x128xf32>
      %20 = tpu.matmul %19, %16, %cst_15 {dimension_numbers = #tpu.dot_dimension_numbers<[1], [1], [0], [0], [0, 0, 1, 0], [], []>} : vector<128x128xf32>, vector<128x128xf32>, vector<128x128xf32> -> vector<128x128xf32>
      %c128_i32_16 = arith.constant 128 : i32
      %21 = arith.muli %arg1, %c128_i32_16 : i32
      %22 = tpu.iota {dimensions = array<i32: 0>} : vector<128x128xi32>
      %23 = vector.broadcast %21 : i32 to vector<128x128xi32>
      %24 = arith.addi %23, %22 : vector<128x128xi32>
      %25 = tpu.iota {dimensions = array<i32: 1>} : vector<128x128xi32>
      %26 = vector.broadcast %6 : i32 to vector<128x128xi32>
      %27 = arith.addi %26, %25 : vector<128x128xi32>
      %28 = arith.cmpi sgt, %27, %24 : vector<128x128xi32>
      %cst_17 = arith.constant 0xFF800000 : f32
      %29 = vector.broadcast %cst_17 : f32 to vector<128x128xf32>
      %30 = arith.select %28, %29, %20 : vector<128x128xi1>, vector<128x128xf32>
      %c0_18 = arith.constant 0 : index
      %c0_19 = arith.constant 0 : index
      %31 = vector.load %arg10[%c0_18, %c0_19] : memref<128x1xf32, #tpu.memory_space<vmem>>, vector<128x1xf32>
      %cst_20 = arith.constant dense<0xFF800000> : vector<128xf32>
      %32 = vector.multi_reduction <maximumf>, %30, %cst_20 [1] : vector<128x128xf32> to vector<128xf32>
      %33 = vector.shape_cast %32 : vector<128xf32> to vector<128x1xf32>
      %34 = arith.maximumf %31, %33 : vector<128x1xf32>
      %35 = arith.subf %31, %34 : vector<128x1xf32>
      %36 = math.exp %35 : vector<128x1xf32>
      %37 = vector.broadcast %34 : vector<128x1xf32> to vector<128x128xf32>
      %38 = arith.subf %30, %37 : vector<128x128xf32>
      %39 = math.exp %38 : vector<128x128xf32>
      %c0_21 = arith.constant 0 : index
      %c0_22 = arith.constant 0 : index
      %40 = vector.load %arg11[%c0_21, %c0_22] : memref<128x1xf32, #tpu.memory_space<vmem>>, vector<128x1xf32>
      %41 = arith.mulf %36, %40 : vector<128x1xf32>
      %cst_23 = arith.constant dense<0.000000e+00> : vector<128xf32>
      %42 = vector.multi_reduction <add>, %39, %cst_23 [1] : vector<128x128xf32> to vector<128xf32>
      %43 = vector.shape_cast %42 : vector<128xf32> to vector<128x1xf32>
      %44 = arith.addf %41, %43 : vector<128x1xf32>
      %c0_24 = arith.constant 0 : index
      %c0_25 = arith.constant 0 : index
      %45 = vector.load %arg11[%c0_24, %c0_25] : memref<128x1xf32, #tpu.memory_space<vmem>>, vector<128x1xf32>
      tpu.vector_store %arg11[%c0_24, %c0_25], %44 {strides = array<i32>} : memref<128x1xf32, #tpu.memory_space<vmem>>, vector<128x1xf32>,
      %c0_26 = arith.constant 0 : index
      %c0_27 = arith.constant 0 : index
      %46 = vector.load %arg12[%c0_26, %c0_27] : memref<128x128xf32, #tpu.memory_space<vmem>>, vector<128x128xf32>
      %47 = vector.broadcast %36 : vector<128x1xf32> to vector<128x128xf32>
      %48 = arith.mulf %47, %46 : vector<128x128xf32>
      %cst_28 = arith.constant dense<0.000000e+00> : vector<128x128xf32>
      %49 = tpu.matmul %39, %18, %cst_28 {dimension_numbers = #tpu.dot_dimension_numbers<[1], [0], [0], [1], [0, 0, 1, 1], [], []>} : vector<128x128xf32>, vector<128x128xf32>, vector<128x128xf32> -> vector<128x128xf32>
      %50 = arith.addf %48, %49 : vector<128x128xf32>
      %c0_29 = arith.constant 0 : index
      %c0_30 = arith.constant 0 : index
      %51 = vector.load %arg12[%c0_29, %c0_30] : memref<128x128xf32, #tpu.memory_space<vmem>>, vector<128x128xf32>
      tpu.vector_store %arg12[%c0_29, %c0_30], %50 {strides = array<i32>} : memref<128x128xf32, #tpu.memory_space<vmem>>, vector<128x128xf32>,
      %c0_31 = arith.constant 0 : index
      %c0_32 = arith.constant 0 : index
      %52 = vector.load %arg10[%c0_31, %c0_32] : memref<128x1xf32, #tpu.memory_space<vmem>>, vector<128x1xf32>
      tpu.vector_store %arg10[%c0_31, %c0_32], %34 {strides = array<i32>} : memref<128x1xf32, #tpu.memory_space<vmem>>, vector<128x1xf32>,
    } else {
    }
    %c0_i32_4 = arith.constant 0 : i32
    %10 = arith.cmpi eq, %arg2, %c0_i32_4 : i32
    %11 = arith.extui %10 : i1 to i32
    %c0_i32_5 = arith.constant 0 : i32
    %12 = arith.cmpi ne, %11, %c0_i32_5 : i32
    scf.if %12 {
      %c0 = arith.constant 0 : index
      %c0_6 = arith.constant 0 : index
      %13 = vector.load %arg11[%c0, %c0_6] : memref<128x1xf32, #tpu.memory_space<vmem>>, vector<128x1xf32>
      %14 = tpu.reciprocal %13 {approx = true} : vector<128x1xf32> -> vector<128x1xf32>
      %c0_7 = arith.constant 0 : index
      %c0_8 = arith.constant 0 : index
      %15 = vector.load %arg12[%c0_7, %c0_8] : memref<128x128xf32, #tpu.memory_space<vmem>>, vector<128x128xf32>
      %16 = vector.broadcast %14 : vector<128x1xf32> to vector<128x128xf32>
      %17 = arith.mulf %15, %16 : vector<128x128xf32>
      %c0_9 = arith.constant 0 : index
      %c0_10 = arith.constant 0 : index
      %c0_11 = arith.constant 0 : index
      %18 = vector.load %arg8[%c0_9, %c0_10, %c0_11] : memref<1x128x128xf32, #tpu.memory_space<vmem>>, vector<1x128x128xf32>
      %19 = vector.shape_cast %18 : vector<1x128x128xf32> to vector<128x128xf32>
      %20 = vector.shape_cast %17 : vector<128x128xf32> to vector<1x128x128xf32>
      tpu.vector_store %arg8[%c0_9, %c0_10, %c0_11], %20 {strides = array<i32>} : memref<1x128x128xf32, #tpu.memory_space<vmem>>, vector<1x128x128xf32>,
    } else {
    }
    return
  }
  func.func @transform_0(%arg0: i32, %arg1: i32, %arg2: i32) -> (i32, i32, i32) {
    %c0_i32 = arith.constant 0 : i32
    %c0_i32_0 = arith.constant 0 : i32
    return %arg0, %arg1, %c0_i32 : i32, i32, i32
  }
  func.func @transform_1(%arg0: i32, %arg1: i32, %arg2: i32) -> (i32, i32, i32) {
    %c0_i32 = arith.constant 0 : i32
    %c0_i32_0 = arith.constant 0 : i32
    return %arg0, %arg2, %c0_i32 : i32, i32, i32
  }
  func.func @transform_2(%arg0: i32, %arg1: i32, %arg2: i32) -> (i32, i32) {
    %c0_i32 = arith.constant 0 : i32
    %c0_i32_0 = arith.constant 0 : i32
    %c0_i32_1 = arith.constant 0 : i32
    return %c0_i32, %c0_i32_0 : i32, i32
  }
  func.func @transform_3(%arg0: i32, %arg1: i32, %arg2: i32) -> (i32, i32) {
    %c0_i32 = arith.constant 0 : i32
    %c0_i32_0 = arith.constant 0 : i32
    %c0_i32_1 = arith.constant 0 : i32
    return %c0_i32, %c0_i32_0 : i32, i32
  }
  func.func @transform_4(%arg0: i32, %arg1: i32, %arg2: i32) -> (i32, i32) {
    %c0_i32 = arith.constant 0 : i32
    %c0_i32_0 = arith.constant 0 : i32
    %c0_i32_1 = arith.constant 0 : i32
    return %c0_i32, %c0_i32_0 : i32, i32
  }
  func.func @transform_5(%arg0: i32, %arg1: i32, %arg2: i32) -> (i32, i32, i32) {
    %c0_i32 = arith.constant 0 : i32
    %c0_i32_0 = arith.constant 0 : i32
    return %arg0, %arg1, %c0_i32 : i32, i32, i32
  }
}

</mosaic_0001>

<llo_original>
// kernel: tpu_custom_call.1
$region0: #{tpu_custom_call.1}
  #allocation0 [shape = 'u32[]', space=smem, size = 0x4, offset = 0x4, fixed_abs, tag = 'smem constant byte address 0x4 - core index']
  #allocation1 [shape = 'u32[72,128]{1,0:T(1,128)}', space=vmem, size = 0x9000, scoped, tag = 'internal scratch']
  #allocation2 [shape = 'f32[128,128]{1,0:T(8,128)}', space=vmem, size = 0x10000, scoped, tag = 'scratch operand']
  #allocation3 [shape = 'f32[128,1]{1,0:T(8,128)}', space=vmem, size = 0x10000, scoped, tag = 'scratch operand']
  #allocation4 [shape = 'f32[128,1]{1,0:T(8,128)}', space=vmem, size = 0x10000, scoped, tag = 'scratch operand']
  #allocation5 [shape = 'f32[128,128]{1,0:T(8,128)}', space=vmem, size = 0x10000, scoped, tag = 'scratch operand']
  %s0 = inlined_call_operand.hbm [shape: f32[2,128,128], index: 0, kind: input, shape index: {}]
  %s1 = inlined_call_operand.hbm [shape: f32[2,128,128], index: 1, kind: input, shape index: {}]
  %s2 = inlined_call_operand.hbm [shape: f32[128,128], index: 2, kind: input, shape index: {}]
  %s3 = inlined_call_operand.hbm [shape: f32[128,128], index: 3, kind: input, shape index: {}]
  %s4 = inlined_call_operand.hbm [shape: f32[128,128], index: 4, kind: input, shape index: {}]
  %s5 = inlined_call_operand.hbm [shape: f32[2,128,128], index: 5, kind: output, shape index: {}]
  %s6 = sld [smem:[#allocation0]]
  $region85: #{tpu_custom_call.1} parent=0
    _
  %s8 = ssub.s32 1, %s6
  %s9 = scalar_select 0, %s8, %s6
  $region1: #{tpu_custom_call.1} parent=0
    #allocation6 [shape = 'u8[131072]{0}', space=vmem, size = 0x20000, scoped, tag = 'input window, operand 0']
    #allocation7 [shape = 's32[2]{0}', space=sflag, size = 0x8, scoped, tag = 'scoped memory for tpu_custom_call.1']
    #allocation8 [shape = 's32[2]{0}', space=sflag, size = 0x8, scoped, tag = 'scoped memory for tpu_custom_call.1']
    #allocation9 [shape = 'u8[131072]{0}', space=vmem, size = 0x20000, scoped, tag = 'input window, operand 1']
    #allocation10 [shape = 's32[2]{0}', space=sflag, size = 0x8, scoped, tag = 'scoped memory for tpu_custom_call.1']
    #allocation11 [shape = 'u8[65536]{0}', space=vmem, size = 0x10000, scoped, tag = 'input window, operand 2, single buffered']
    #allocation12 [shape = 'u8[65536]{0}', space=vmem, size = 0x10000, scoped, tag = 'input window, operand 3, single buffered']
    #allocation13 [shape = 's32[1]{0}', space=sflag, size = 0x4, scoped, tag = 'scoped memory for tpu_custom_call.1']
    #allocation14 [shape = 'u8[65536]{0}', space=vmem, size = 0x10000, scoped, tag = 'input window, operand 4, single buffered']
    #allocation15 [shape = 'u8[131072]{0}', space=vmem, size = 0x20000, scoped, tag = 'output window, operand 0']
    %10 = vsyncpa [#allocation7], 0
    %s11 = scalar_lea.sflag [#allocation7], 1
    %12 = vsyncpa %s11, 0
    %13 = vsyncpa [#allocation10], 0
    %s14 = scalar_lea.sflag [#allocation10], 1
    %15 = vsyncpa %s14, 0
    %16 = vsyncpa [#allocation13], 0
    %17 = vsyncpa [#allocation8], 0
    %s18 = scalar_lea.sflag [#allocation8], 1
    %19 = vsyncpa %s18, 0
    loop: start=0, step=1, limit=4
    $region2: #{tpu_custom_call.1} parent=1 // loop_pre_header
      _
    $region3: #{tpu_custom_call.1} parent=1 // loop_header
      %s21 = sphi 0, %s25
      %p22 = scmp.ge.s32.totalorder %s21, 4
      %s28 = sphi 0, %s47
      %s29 = sphi 0, %s43
      %s30 = sphi 0, %s39
      %s31 = sphi 0, %s28
      %s32 = sphi 0, %s29
      %s33 = sphi 0, %s30
      %s34 = sphi 0, %s31
      %s35 = sphi 0, %s32
      %s36 = sphi 0, %s33
      %s52 = sphi 0, %s54
      %s55 = sphi 0, %s52
      %s56 = sphi 0, %s55
      %s72 = sphi 0, %s56
      %s80 = sphi 0, %s82
      %s83 = sphi 0, %s80
      %s84 = sphi 0, %s83
      %s100 = sphi 0, %s84
      %s104 = sphi 0, %s104
      %s106 = sphi 0, %s104
      %s107 = sphi 0, %s106
      %s121 = sphi 0, %s107
      %s125 = sphi 0, %s125
      %s127 = sphi 0, %s125
      %s128 = sphi 0, %s127
      %s142 = sphi 0, %s128
      %s146 = sphi 0, %s146
      %s148 = sphi 0, %s146
      %s149 = sphi 0, %s148
      %s163 = sphi 0, %s149
      %s171 = sphi 0, %s173
      %s174 = sphi 0, %s171
      %s175 = sphi 0, %s174
      %s191 = sphi 0, %s175
    $region4: #{tpu_custom_call.1} parent=1 // loop_header_branch
      %24 = sbr.rel (%p22) target = $region8
    $region5: #{tpu_custom_call.1} parent=1 // loop_body
      %s26 = ssub.s32 %s21, 1
      %s27 = ssub.s32 %s21, 2
      %s37 = sadd.s32 1, %s30
      %p38 = scmp.ge.s32.totalorder %s37, 1
      %s39 = scalar_select %p38, 0, %s37
      %s40 = sadd.s32 1, %s29
      %s41 = scalar_select %p38, %s40, %s29
      %p42 = scmp.ge.s32.totalorder %s41, 1
      %s43 = scalar_select %p42, 0, %s41
      %s44 = sadd.s32 1, %s28
      %s45 = scalar_select %p42, %s44, %s28
      %p46 = scmp.ge.s32.totalorder %s45, 2
      %s47 = scalar_select %p46, 0, %s45
      %s48 = ssub.s32 %s28, %s47
      %s49 = ssub.s32 %s29, %s43
      %s50 = sor.u32 %s48, %s49
      %p51 = scmp.eq.s32.totalorder %s50, 0
      %s53 = sadd.s32 %s52, 1
      %s54 = scalar_select %p51, %s52, %s53
      %p57 = pneg %p51
      %p58 = scmp.eq.s32.totalorder %s21, 1
      %p59 = por %p57, %p58
      %p60 = scmp.ne.s32.totalorder %s52, %s55
      %p61 = scmp.eq.s32.totalorder %s21, 0
      %p62 = por %p60, %p61
      %p63 = scmp.ne.s32.totalorder %s52, %s55
      %p64 = scmp.eq.s32.totalorder %s26, 1
      %p65 = por %p63, %p64
      %p66 = scmp.ne.s32.totalorder %s55, %s56
      %p67 = scmp.eq.s32.totalorder %s26, 0
      %p68 = por %p66, %p67
      %p69 = scmp.ne.s32.totalorder %s55, %s56
      %p70 = scmp.eq.s32.totalorder %s27, 1
      %p71 = por %p69, %p70
      %p73 = scmp.ne.s32.totalorder %s56, %s72
      %p74 = scmp.eq.s32.totalorder %s27, 0
      %p75 = por %p73, %p74
      %s76 = ssub.s32 %s28, %s47
      %s77 = ssub.s32 %s30, %s39
      %s78 = sor.u32 %s76, %s77
      %p79 = scmp.eq.s32.totalorder %s78, 0
      %s81 = sadd.s32 %s80, 1
      %s82 = scalar_select %p79, %s80, %s81
      %p85 = pneg %p79
      %p86 = scmp.eq.s32.totalorder %s21, 1
      %p87 = por %p85, %p86
      %p88 = scmp.ne.s32.totalorder %s80, %s83
      %p89 = scmp.eq.s32.totalorder %s21, 0
      %p90 = por %p88, %p89
      %p91 = scmp.ne.s32.totalorder %s80, %s83
      %p92 = scmp.eq.s32.totalorder %s26, 1
      %p93 = por %p91, %p92
      %p94 = scmp.ne.s32.totalorder %s83, %s84
      %p95 = scmp.eq.s32.totalorder %s26, 0
      %p96 = por %p94, %p95
      %p97 = scmp.ne.s32.totalorder %s83, %s84
      %p98 = scmp.eq.s32.totalorder %s27, 1
      %p99 = por %p97, %p98
      %p101 = scmp.ne.s32.totalorder %s84, %s100
      %p102 = scmp.eq.s32.totalorder %s27, 0
      %p103 = por %p101, %p102
      %s105 = sadd.s32 %s104, 1
      %p108 = scmp.eq.s32.totalorder %s21, 1
      %p109 = scmp.ne.s32.totalorder %s104, %s106
      %p110 = scmp.eq.s32.totalorder %s21, 0
      %p111 = por %p109, %p110
      %p112 = scmp.ne.s32.totalorder %s104, %s106
      %p113 = scmp.eq.s32.totalorder %s26, 1
      %p114 = por %p112, %p113
      %p115 = scmp.ne.s32.totalorder %s106, %s107
      %p116 = scmp.eq.s32.totalorder %s26, 0
      %p117 = por %p115, %p116
      %p118 = scmp.ne.s32.totalorder %s106, %s107
      %p119 = scmp.eq.s32.totalorder %s27, 1
      %p120 = por %p118, %p119
      %p122 = scmp.ne.s32.totalorder %s107, %s121
      %p123 = scmp.eq.s32.totalorder %s27, 0
      %p124 = por %p122, %p123
      %s126 = sadd.s32 %s125, 1
      %p129 = scmp.eq.s32.totalorder %s21, 1
      %p130 = scmp.ne.s32.totalorder %s125, %s127
      %p131 = scmp.eq.s32.totalorder %s21, 0
      %p132 = por %p130, %p131
      %p133 = scmp.ne.s32.totalorder %s125, %s127
      %p134 = scmp.eq.s32.totalorder %s26, 1
      %p135 = por %p133, %p134
      %p136 = scmp.ne.s32.totalorder %s127, %s128
      %p137 = scmp.eq.s32.totalorder %s26, 0
      %p138 = por %p136, %p137
      %p139 = scmp.ne.s32.totalorder %s127, %s128
      %p140 = scmp.eq.s32.totalorder %s27, 1
      %p141 = por %p139, %p140
      %p143 = scmp.ne.s32.totalorder %s128, %s142
      %p144 = scmp.eq.s32.totalorder %s27, 0
      %p145 = por %p143, %p144
      %s147 = sadd.s32 %s146, 1
      %p150 = scmp.eq.s32.totalorder %s21, 1
      %p151 = scmp.ne.s32.totalorder %s146, %s148
      %p152 = scmp.eq.s32.totalorder %s21, 0
      %p153 = por %p151, %p152
      %p154 = scmp.ne.s32.totalorder %s146, %s148
      %p155 = scmp.eq.s32.totalorder %s26, 1
      %p156 = por %p154, %p155
      %p157 = scmp.ne.s32.totalorder %s148, %s149
      %p158 = scmp.eq.s32.totalorder %s26, 0
      %p159 = por %p157, %p158
      %p160 = scmp.ne.s32.totalorder %s148, %s149
      %p161 = scmp.eq.s32.totalorder %s27, 1
      %p162 = por %p160, %p161
      %p164 = scmp.ne.s32.totalorder %s149, %s163
      %p165 = scmp.eq.s32.totalorder %s27, 0
      %p166 = por %p164, %p165
      %s167 = ssub.s32 %s28, %s47
      %s168 = ssub.s32 %s29, %s43
      %s169 = sor.u32 %s167, %s168
      %p170 = scmp.eq.s32.totalorder %s169, 0
      %s172 = sadd.s32 %s171, 1
      %s173 = scalar_select %p170, %s171, %s172
      %p176 = pneg %p170
      %p177 = scmp.eq.s32.totalorder %s21, 1
      %p178 = por %p176, %p177
      %p179 = scmp.ne.s32.totalorder %s171, %s174
      %p180 = scmp.eq.s32.totalorder %s21, 0
      %p181 = por %p179, %p180
      %p182 = scmp.ne.s32.totalorder %s171, %s174
      %p183 = scmp.eq.s32.totalorder %s26, 1
      %p184 = por %p182, %p183
      %p185 = scmp.ne.s32.totalorder %s174, %s175
      %p186 = scmp.eq.s32.totalorder %s26, 0
      %p187 = por %p185, %p186
      %p188 = scmp.ne.s32.totalorder %s174, %s175
      %p189 = scmp.eq.s32.totalorder %s27, 1
      %p190 = por %p188, %p189
      %p192 = scmp.ne.s32.totalorder %s175, %s191
      %p193 = scmp.eq.s32.totalorder %s27, 0
      %p194 = por %p192, %p193
      %p195 = scmp.le.s32.totalorder 1, %s21
      %p196 = scmp.lt.s32.totalorder %s21, 3
      %p197 = pnand %p195, %p196
      %p198 = pneg %p197
      // Predicated region
      $region9: #{tpu_custom_call.1} parent=5 // pred_check
        _
      $region10: #{tpu_custom_call.1} parent=5 // pred_check_branch
        %200 = sbr.rel (%p197) target = $region12
      $region11: #{tpu_custom_call.1} parent=5 // pred_region
        %s201 = ssub.s32 %s21, 1
        // Predicated region
        $region13: #{tpu_custom_call.1} parent=11 // pred_check
          %p202 = pneg %p117
        $region14: #{tpu_custom_call.1} parent=11 // pred_check_branch
          %204 = sbr.rel (%p202) target = $region16
        $region15: #{tpu_custom_call.1} parent=11 // pred_region
          %206 = vsyncadd [#allocation10], 0
          %s207 = sshll.u32 %s2, 4
          %s208 = int_to_ptr.hbm [resolvable:$true] %s207
          %s209 = sshll.u32 [#allocation11], 4
          %s210 = int_to_ptr.vmem [resolvable:$true] %s209
          %215 = dma.hbm_to_vmem [thread:$0]  %s208, 2048, %s210, [#allocation10], 128, 128, 8
        $region16: #{tpu_custom_call.1} parent=11 // pred_fallthru
          _
        // Predicated region
        $region17: #{tpu_custom_call.1} parent=11 // pred_check
          %p216 = pneg %p138
        $region18: #{tpu_custom_call.1} parent=11 // pred_check_branch
          %218 = sbr.rel (%p216) target = $region20
        $region19: #{tpu_custom_call.1} parent=11 // pred_region
          %220 = vsyncadd [#allocation13], 0
          %s221 = sshll.u32 %s3, 4
          %s222 = int_to_ptr.hbm [resolvable:$true] %s221
          %s223 = sshll.u32 [#allocation12], 4
          %s224 = int_to_ptr.vmem [resolvable:$true] %s223
          %229 = dma.hbm_to_vmem [thread:$0]  %s222, 2048, %s224, [#allocation13], 128, 128, 8
        $region20: #{tpu_custom_call.1} parent=11 // pred_fallthru
          _
        // Predicated region
        $region21: #{tpu_custom_call.1} parent=11 // pred_check
          %p230 = pneg %p159
        $region22: #{tpu_custom_call.1} parent=11 // pred_check_branch
          %232 = sbr.rel (%p230) target = $region24
        $region23: #{tpu_custom_call.1} parent=11 // pred_region
          %234 = vsyncadd [#allocation13], 0
          %s235 = sshll.u32 %s4, 4
          %s236 = int_to_ptr.hbm [resolvable:$true] %s235
          %s237 = sshll.u32 [#allocation14], 4
          %s238 = int_to_ptr.vmem [resolvable:$true] %s237
          %243 = dma.hbm_to_vmem [thread:$0]  %s236, 2048, %s238, [#allocation13], 128, 128, 8
        $region24: #{tpu_custom_call.1} parent=11 // pred_fallthru
          _
      $region12: #{tpu_custom_call.1} parent=5 // pred_fallthru
        _
      %p244 = scmp.lt.s32.totalorder %s21, 2
      // Predicated region
      $region25: #{tpu_custom_call.1} parent=5 // pred_check
        %p245 = pneg %p244
      $region26: #{tpu_custom_call.1} parent=5 // pred_check_branch
        %247 = sbr.rel (%p245) target = $region28
      $region27: #{tpu_custom_call.1} parent=5 // pred_region
        // Predicated region
        $region29: #{tpu_custom_call.1} parent=27 // pred_check
          %p248 = pneg %p62
        $region30: #{tpu_custom_call.1} parent=27 // pred_check_branch
          %250 = sbr.rel (%p248) target = $region32
        $region31: #{tpu_custom_call.1} parent=27 // pred_region
          %s251 = sand.u32 %s52, 1
          %s252 = scalar_lea.sflag [#allocation7], %s251
          %s253 = sand.u32 %s52, 1
          %s254 = smul.addr %s253, 128
          %s255 = scalar_lea.vmem [#allocation6], %s254
          %s256 = smul.u32 16, %s29
          %258 = vsyncadd %s252, 0
          %s259 = smul.addr %s28, 16
          %s260 = sadd.s32 %s256, %s259
          %s261 = smul.addr %s260, 8
          %s262 = scalar_lea.hbm %s0, %s261
          %s263 = sshll.u32 %s262, 4
          %s264 = int_to_ptr.hbm [resolvable:$true] %s263
          %s265 = sshll.u32 %s255, 4
          %s266 = int_to_ptr.vmem [resolvable:$true] %s265
          %271 = dma.hbm_to_vmem [thread:$0]  %s264, 2048, %s266, %s252, 128, 128, 8
        $region32: #{tpu_custom_call.1} parent=27 // pred_fallthru
          _
        // Predicated region
        $region33: #{tpu_custom_call.1} parent=27 // pred_check
          %p272 = pneg %p90
        $region34: #{tpu_custom_call.1} parent=27 // pred_check_branch
          %274 = sbr.rel (%p272) target = $region36
        $region35: #{tpu_custom_call.1} parent=27 // pred_region
          %s275 = sand.u32 %s21, 1
          %s276 = scalar_lea.sflag [#allocation10], %s275
          %s277 = sand.u32 %s80, 1
          %s278 = smul.addr %s277, 128
          %s279 = scalar_lea.vmem [#allocation9], %s278
          %s280 = smul.u32 16, %s30
          %282 = vsyncadd %s276, 0
          %s283 = smul.addr %s28, 16
          %s284 = sadd.s32 %s280, %s283
          %s285 = smul.addr %s284, 8
          %s286 = scalar_lea.hbm %s1, %s285
          %s287 = sshll.u32 %s286, 4
          %s288 = int_to_ptr.hbm [resolvable:$true] %s287
          %s289 = sshll.u32 %s279, 4
          %s290 = int_to_ptr.vmem [resolvable:$true] %s289
          %295 = dma.hbm_to_vmem [thread:$0]  %s288, 2048, %s290, %s276, 128, 128, 8
        $region36: #{tpu_custom_call.1} parent=27 // pred_fallthru
          _
      $region28: #{tpu_custom_call.1} parent=5 // pred_fallthru
        _
      %p296 = scmp.le.s32.totalorder 1, %s21
      %p297 = scmp.lt.s32.totalorder %s21, 3
      %p298 = pnand %p296, %p297
      %p299 = pneg %p298
      // Predicated region
      $region37: #{tpu_custom_call.1} parent=5 // pred_check
        _
      $region38: #{tpu_custom_call.1} parent=5 // pred_check_branch
        %301 = sbr.rel (%p298) target = $region40
      $region39: #{tpu_custom_call.1} parent=5 // pred_region
        %s302 = ssub.s32 %s21, 1
        %s303 = sand.u32 %s55, 1
        %s304 = scalar_lea.sflag [#allocation7], %s303
        %s305 = sand.u32 %s55, 1
        %s306 = smul.addr %s305, 128
        %s307 = scalar_lea.vmem [#allocation6], %s306
        // Predicated region
        $region41: #{tpu_custom_call.1} parent=39 // pred_check
          %p308 = pneg %p68
        $region42: #{tpu_custom_call.1} parent=39 // pred_check_branch
          %310 = sbr.rel (%p308) target = $region44
        $region43: #{tpu_custom_call.1} parent=39 // pred_region
          %312 = dma.done %s304, 2048
        $region44: #{tpu_custom_call.1} parent=39 // pred_fallthru
          _
        %s313 = sand.u32 %s26, 1
        %s314 = scalar_lea.sflag [#allocation10], %s313
        %s315 = sand.u32 %s83, 1
        %s316 = smul.addr %s315, 128
        %s317 = scalar_lea.vmem [#allocation9], %s316
        // Predicated region
        $region45: #{tpu_custom_call.1} parent=39 // pred_check
          %p318 = pneg %p96
        $region46: #{tpu_custom_call.1} parent=39 // pred_check_branch
          %320 = sbr.rel (%p318) target = $region48
        $region47: #{tpu_custom_call.1} parent=39 // pred_region
          %322 = dma.done %s314, 2048
        $region48: #{tpu_custom_call.1} parent=39 // pred_fallthru
          _
        // Predicated region
        $region49: #{tpu_custom_call.1} parent=39 // pred_check
          %p323 = pneg %p117
        $region50: #{tpu_custom_call.1} parent=39 // pred_check_branch
          %325 = sbr.rel (%p323) target = $region52
        $region51: #{tpu_custom_call.1} parent=39 // pred_region
          %327 = dma.done [#allocation10], 2048
        $region52: #{tpu_custom_call.1} parent=39 // pred_fallthru
          _
        // Predicated region
        $region53: #{tpu_custom_call.1} parent=39 // pred_check
          %p328 = pneg %p138
        $region54: #{tpu_custom_call.1} parent=39 // pred_check_branch
          %330 = sbr.rel (%p328) target = $region56
        $region55: #{tpu_custom_call.1} parent=39 // pred_region
          %332 = dma.done [#allocation13], 2048
        $region56: #{tpu_custom_call.1} parent=39 // pred_fallthru
          _
        // Predicated region
        $region57: #{tpu_custom_call.1} parent=39 // pred_check
          %p333 = pneg %p159
        $region58: #{tpu_custom_call.1} parent=39 // pred_check_branch
          %335 = sbr.rel (%p333) target = $region60
        $region59: #{tpu_custom_call.1} parent=39 // pred_region
          %337 = dma.done [#allocation13], 2048
        $region60: #{tpu_custom_call.1} parent=39 // pred_fallthru
          _
        %s338 = sand.u32 %s55, 1
        %s339 = scalar_lea.sflag [#allocation7], %s338
        %s340 = sand.u32 %s55, 1
        %s341 = smul.addr %s340, 128
        %s342 = scalar_lea.vmem [#allocation6], %s341
        %p343 = pneg %p68
        %p344 = pneg %p65
        %s345 = sand.u32 %s26, 1
        %s346 = scalar_lea.sflag [#allocation10], %s345
        %s347 = sand.u32 %s83, 1
        %s348 = smul.addr %s347, 128
        %s349 = scalar_lea.vmem [#allocation9], %s348
        %p350 = pneg %p96
        %p351 = pneg %p93
        %p352 = pneg %p117
        %p353 = pneg %p114
        %p354 = pneg %p138
        %p355 = pneg %p135
        %p356 = pneg %p159
        %p357 = pneg %p156
        %p358 = pneg %p187
        %p359 = pneg %p184
        %s360 = sand.u32 %s174, 1
        %s361 = scalar_lea.sflag [#allocation8], %s360
        %s362 = sand.u32 %s174, 1
        %s363 = smul.addr %s362, 128
        %s364 = scalar_lea.vmem [#allocation15], %s363
        %s365 = smul.u32 16, %s32
        %s366 = smul.u32 16, %s33
        %s367 = smul.u32 16, %s32
        %p368 = scmp.eq.s32.totalorder %s33, 0
        // Predicated region
        $region61: #{tpu_custom_call.1} parent=39 // pred_check
          %p369 = pneg %p368
        $region62: #{tpu_custom_call.1} parent=39 // pred_check_branch
          %371 = sbr.rel (%p369) target = $region64
        $region63: #{tpu_custom_call.1} parent=39 // pred_region
          %v372 = vld [vmem:[%s307] sm:$0xff]
          %v373 = vld [vmem:[%s307 + $0x8] sm:$0xff]
          %v374 = vld [vmem:[%s307 + $0x10] sm:$0xff]
          %v375 = vld [vmem:[%s307 + $0x18] sm:$0xff]
          %v376 = vld [vmem:[%s307 + $0x20] sm:$0xff]
          %v377 = vld [vmem:[%s307 + $0x28] sm:$0xff]
          %v378 = vld [vmem:[%s307 + $0x30] sm:$0xff]
          %v379 = vld [vmem:[%s307 + $0x38] sm:$0xff]
          %v380 = vld [vmem:[%s307 + $0x40] sm:$0xff]
          %v381 = vld [vmem:[%s307 + $0x48] sm:$0xff]
          %v382 = vld [vmem:[%s307 + $0x50] sm:$0xff]
          %v383 = vld [vmem:[%s307 + $0x58] sm:$0xff]
          %v384 = vld [vmem:[%s307 + $0x60] sm:$0xff]
          %v385 = vld [vmem:[%s307 + $0x68] sm:$0xff]
          %v386 = vld [vmem:[%s307 + $0x70] sm:$0xff]
          %v387 = vld [vmem:[%s307 + $0x78] sm:$0xff]
          %v388 = vld [vmem:[#allocation11] sm:$0xff]
          %v389 = vld [vmem:[#allocation11 + $0x8] sm:$0xff]
          %v390 = vld [vmem:[#allocation11 + $0x10] sm:$0xff]
          %v391 = vld [vmem:[#allocation11 + $0x18] sm:$0xff]
          %v392 = vld [vmem:[#allocation11 + $0x20] sm:$0xff]
          %v393 = vld [vmem:[#allocation11 + $0x28] sm:$0xff]
          %v394 = vld [vmem:[#allocation11 + $0x30] sm:$0xff]
          %v395 = vld [vmem:[#allocation11 + $0x38] sm:$0xff]
          %v396 = vld [vmem:[#allocation11 + $0x40] sm:$0xff]
          %v397 = vld [vmem:[#allocation11 + $0x48] sm:$0xff]
          %v398 = vld [vmem:[#allocation11 + $0x50] sm:$0xff]
          %v399 = vld [vmem:[#allocation11 + $0x58] sm:$0xff]
          %v400 = vld [vmem:[#allocation11 + $0x60] sm:$0xff]
          %v401 = vld [vmem:[#allocation11 + $0x68] sm:$0xff]
          %v402 = vld [vmem:[#allocation11 + $0x70] sm:$0xff]
          %v403 = vld [vmem:[#allocation11 + $0x78] sm:$0xff]
          %404 = vmatpush.msra.mxu0 %v403
          %405 = vmatpush.msra.mxu0 %v402
          %406 = vmatpush.msra.mxu0 %v401
          %407 = vmatpush.msra.mxu0 %v400
          %408 = vmatpush.msra.mxu0 %v399
          %409 = vmatpush.msra.mxu0 %v398
          %410 = vmatpush.msra.mxu0 %v397
          %411 = vmatpush.msra.mxu0 %v396
          %412 = vmatpush.msra.mxu0 %v395
          %413 = vmatpush.msra.mxu0 %v394
          %414 = vmatpush.msra.mxu0 %v393
          %415 = vmatpush.msra.mxu0 %v392
          %416 = vmatpush.msra.mxu0 %v391
          %417 = vmatpush.msra.mxu0 %v390
          %418 = vmatpush.msra.mxu0 %v389
          %419 = vmatpush.msra.mxu0 %v388
          %420 = vmatmul.f32.gmra.mxu0 %v372
          %v421 = vpop.f32.mrf.mxu0
          %v422 = vadd.f32 0.0, %v421
          %423 = vmatmul.f32.gmra.mxu0 %v373
          %v424 = vpop.f32.mrf.mxu0
          %v425 = vadd.f32 0.0, %v424
          %426 = vmatmul.f32.gmra.mxu0 %v374
          %v427 = vpop.f32.mrf.mxu0
          %v428 = vadd.f32 0.0, %v427
          %429 = vmatmul.f32.gmra.mxu0 %v375
          %v430 = vpop.f32.mrf.mxu0
          %v431 = vadd.f32 0.0, %v430
          %432 = vmatmul.f32.gmra.mxu0 %v376
          %v433 = vpop.f32.mrf.mxu0
          %v434 = vadd.f32 0.0, %v433
          %435 = vmatmul.f32.gmra.mxu0 %v377
          %v436 = vpop.f32.mrf.mxu0
          %v437 = vadd.f32 0.0, %v436
          %438 = vmatmul.f32.gmra.mxu0 %v378
          %v439 = vpop.f32.mrf.mxu0
          %v440 = vadd.f32 0.0, %v439
          %441 = vmatmul.f32.gmra.mxu0 %v379
          %v442 = vpop.f32.mrf.mxu0
          %v443 = vadd.f32 0.0, %v442
          %444 = vmatmul.f32.gmra.mxu0 %v380
          %v445 = vpop.f32.mrf.mxu0
          %v446 = vadd.f32 0.0, %v445
          %447 = vmatmul.f32.gmra.mxu0 %v381
          %v448 = vpop.f32.mrf.mxu0
          %v449 = vadd.f32 0.0, %v448
          %450 = vmatmul.f32.gmra.mxu0 %v382
          %v451 = vpop.f32.mrf.mxu0
          %v452 = vadd.f32 0.0, %v451
          %453 = vmatmul.f32.gmra.mxu0 %v383
          %v454 = vpop.f32.mrf.mxu0
          %v455 = vadd.f32 0.0, %v454
          %456 = vmatmul.f32.gmra.mxu0 %v384
          %v457 = vpop.f32.mrf.mxu0
          %v458 = vadd.f32 0.0, %v457
          %459 = vmatmul.f32.gmra.mxu0 %v385
          %v460 = vpop.f32.mrf.mxu0
          %v461 = vadd.f32 0.0, %v460
          %462 = vmatmul.f32.gmra.mxu0 %v386
          %v463 = vpop.f32.mrf.mxu0
          %v464 = vadd.f32 0.0, %v463
          %465 = vmatmul.f32.gmra.mxu0 %v387
          %v466 = vpop.f32.mrf.mxu0
          %v467 = vadd.f32 0.0, %v466
          %468 = vdwg.mxu0
          %v469 = vmul.f32 %v422, 0.70710677
          %v470 = vmul.f32 %v425, 0.70710677
          %v471 = vmul.f32 %v428, 0.70710677
          %v472 = vmul.f32 %v431, 0.70710677
          %v473 = vmul.f32 %v434, 0.70710677
          %v474 = vmul.f32 %v437, 0.70710677
          %v475 = vmul.f32 %v440, 0.70710677
          %v476 = vmul.f32 %v443, 0.70710677
          %v477 = vmul.f32 %v446, 0.70710677
          %v478 = vmul.f32 %v449, 0.70710677
          %v479 = vmul.f32 %v452, 0.70710677
          %v480 = vmul.f32 %v455, 0.70710677
          %v481 = vmul.f32 %v458, 0.70710677
          %v482 = vmul.f32 %v461, 0.70710677
          %v483 = vmul.f32 %v464, 0.70710677
          %v484 = vmul.f32 %v467, 0.70710677
          %485 = vst [vmem:[#allocation2] sm:$0xff] %v469
          %486 = vst [vmem:[#allocation2 + $0x8] sm:$0xff] %v470
          %487 = vst [vmem:[#allocation2 + $0x10] sm:$0xff] %v471
          %488 = vst [vmem:[#allocation2 + $0x18] sm:$0xff] %v472
          %489 = vst [vmem:[#allocation2 + $0x20] sm:$0xff] %v473
          %490 = vst [vmem:[#allocation2 + $0x28] sm:$0xff] %v474
          %491 = vst [vmem:[#allocation2 + $0x30] sm:$0xff] %v475
          %492 = vst [vmem:[#allocation2 + $0x38] sm:$0xff] %v476
          %493 = vst [vmem:[#allocation2 + $0x40] sm:$0xff] %v477
          %494 = vst [vmem:[#allocation2 + $0x48] sm:$0xff] %v478
          %495 = vst [vmem:[#allocation2 + $0x50] sm:$0xff] %v479
          %496 = vst [vmem:[#allocation2 + $0x58] sm:$0xff] %v480
          %497 = vst [vmem:[#allocation2 + $0x60] sm:$0xff] %v481
          %498 = vst [vmem:[#allocation2 + $0x68] sm:$0xff] %v482
          %499 = vst [vmem:[#allocation2 + $0x70] sm:$0xff] %v483
          %500 = vst [vmem:[#allocation2 + $0x78] sm:$0xff] %v484
          %vm501 = vcmask 7168
          %502 = vst.msk [vmem:[#allocation3] sm:$0xff] %vm501, -inf
          %503 = vst.msk [vmem:[#allocation3 + $0x8] sm:$0xff] %vm501, -inf
          %504 = vst.msk [vmem:[#allocation3 + $0x10] sm:$0xff] %vm501, -inf
          %505 = vst.msk [vmem:[#allocation3 + $0x18] sm:$0xff] %vm501, -inf
          %506 = vst.msk [vmem:[#allocation3 + $0x20] sm:$0xff] %vm501, -inf
          %507 = vst.msk [vmem:[#allocation3 + $0x28] sm:$0xff] %vm501, -inf
          %508 = vst.msk [vmem:[#allocation3 + $0x30] sm:$0xff] %vm501, -inf
          %509 = vst.msk [vmem:[#allocation3 + $0x38] sm:$0xff] %vm501, -inf
          %510 = vst.msk [vmem:[#allocation3 + $0x40] sm:$0xff] %vm501, -inf
          %511 = vst.msk [vmem:[#allocation3 + $0x48] sm:$0xff] %vm501, -inf
          %512 = vst.msk [vmem:[#allocation3 + $0x50] sm:$0xff] %vm501, -inf
          %513 = vst.msk [vmem:[#allocation3 + $0x58] sm:$0xff] %vm501, -inf
          %514 = vst.msk [vmem:[#allocation3 + $0x60] sm:$0xff] %vm501, -inf
          %515 = vst.msk [vmem:[#allocation3 + $0x68] sm:$0xff] %vm501, -inf
          %516 = vst.msk [vmem:[#allocation3 + $0x70] sm:$0xff] %vm501, -inf
          %517 = vst.msk [vmem:[#allocation3 + $0x78] sm:$0xff] %vm501, -inf
          %518 = vst.msk [vmem:[#allocation4] sm:$0xff] %vm501, 0.0
          %519 = vst.msk [vmem:[#allocation4 + $0x8] sm:$0xff] %vm501, 0.0
          %520 = vst.msk [vmem:[#allocation4 + $0x10] sm:$0xff] %vm501, 0.0
          %521 = vst.msk [vmem:[#allocation4 + $0x18] sm:$0xff] %vm501, 0.0
          %522 = vst.msk [vmem:[#allocation4 + $0x20] sm:$0xff] %vm501, 0.0
          %523 = vst.msk [vmem:[#allocation4 + $0x28] sm:$0xff] %vm501, 0.0
          %524 = vst.msk [vmem:[#allocation4 + $0x30] sm:$0xff] %vm501, 0.0
          %525 = vst.msk [vmem:[#allocation4 + $0x38] sm:$0xff] %vm501, 0.0
          %526 = vst.msk [vmem:[#allocation4 + $0x40] sm:$0xff] %vm501, 0.0
          %527 = vst.msk [vmem:[#allocation4 + $0x48] sm:$0xff] %vm501, 0.0
          %528 = vst.msk [vmem:[#allocation4 + $0x50] sm:$0xff] %vm501, 0.0
          %529 = vst.msk [vmem:[#allocation4 + $0x58] sm:$0xff] %vm501, 0.0
          %530 = vst.msk [vmem:[#allocation4 + $0x60] sm:$0xff] %vm501, 0.0
          %531 = vst.msk [vmem:[#allocation4 + $0x68] sm:$0xff] %vm501, 0.0
          %532 = vst.msk [vmem:[#allocation4 + $0x70] sm:$0xff] %vm501, 0.0
          %533 = vst.msk [vmem:[#allocation4 + $0x78] sm:$0xff] %vm501, 0.0
          %534 = vst [vmem:[#allocation5] sm:$0xff] 0.0
          %535 = vst [vmem:[#allocation5 + $0x8] sm:$0xff] 0.0
          %536 = vst [vmem:[#allocation5 + $0x10] sm:$0xff] 0.0
          %537 = vst [vmem:[#allocation5 + $0x18] sm:$0xff] 0.0
          %538 = vst [vmem:[#allocation5 + $0x20] sm:$0xff] 0.0
          %539 = vst [vmem:[#allocation5 + $0x28] sm:$0xff] 0.0
          %540 = vst [vmem:[#allocation5 + $0x30] sm:$0xff] 0.0
          %541 = vst [vmem:[#allocation5 + $0x38] sm:$0xff] 0.0
          %542 = vst [vmem:[#allocation5 + $0x40] sm:$0xff] 0.0
          %543 = vst [vmem:[#allocation5 + $0x48] sm:$0xff] 0.0
          %544 = vst [vmem:[#allocation5 + $0x50] sm:$0xff] 0.0
          %545 = vst [vmem:[#allocation5 + $0x58] sm:$0xff] 0.0
          %546 = vst [vmem:[#allocation5 + $0x60] sm:$0xff] 0.0
          %547 = vst [vmem:[#allocation5 + $0x68] sm:$0xff] 0.0
          %548 = vst [vmem:[#allocation5 + $0x70] sm:$0xff] 0.0
          %549 = vst [vmem:[#allocation5 + $0x78] sm:$0xff] 0.0
        $region64: #{tpu_custom_call.1} parent=39 // pred_fallthru
          _
        %s550 = sadd.s32 %s32, 1
        %s551 = smul.u32 %s550, 128
        %s552 = ssub.s32 %s551, 1
        %s553 = smul.u32 %s33, 128
        %p554 = scmp.le.s32.totalorder %s553, %s552
        // Predicated region
        $region65: #{tpu_custom_call.1} parent=39 // pred_check
          %p555 = pneg %p554
        $region66: #{tpu_custom_call.1} parent=39 // pred_check_branch
          %557 = sbr.rel (%p555) target = $region68
        $region67: #{tpu_custom_call.1} parent=39 // pred_region
          %v558 = vld [vmem:[%s317] sm:$0xff]
          %v559 = vld [vmem:[%s317 + $0x8] sm:$0xff]
          %v560 = vld [vmem:[%s317 + $0x10] sm:$0xff]
          %v561 = vld [vmem:[%s317 + $0x18] sm:$0xff]
          %v562 = vld [vmem:[%s317 + $0x20] sm:$0xff]
          %v563 = vld [vmem:[%s317 + $0x28] sm:$0xff]
          %v564 = vld [vmem:[%s317 + $0x30] sm:$0xff]
          %v565 = vld [vmem:[%s317 + $0x38] sm:$0xff]
          %v566 = vld [vmem:[%s317 + $0x40] sm:$0xff]
          %v567 = vld [vmem:[%s317 + $0x48] sm:$0xff]
          %v568 = vld [vmem:[%s317 + $0x50] sm:$0xff]
          %v569 = vld [vmem:[%s317 + $0x58] sm:$0xff]
          %v570 = vld [vmem:[%s317 + $0x60] sm:$0xff]
          %v571 = vld [vmem:[%s317 + $0x68] sm:$0xff]
          %v572 = vld [vmem:[%s317 + $0x70] sm:$0xff]
          %v573 = vld [vmem:[%s317 + $0x78] sm:$0xff]
          %v574 = vld [vmem:[#allocation12] sm:$0xff]
          %v575 = vld [vmem:[#allocation12 + $0x8] sm:$0xff]
          %v576 = vld [vmem:[#allocation12 + $0x10] sm:$0xff]
          %v577 = vld [vmem:[#allocation12 + $0x18] sm:$0xff]
          %v578 = vld [vmem:[#allocation12 + $0x20] sm:$0xff]
          %v579 = vld [vmem:[#allocation12 + $0x28] sm:$0xff]
          %v580 = vld [vmem:[#allocation12 + $0x30] sm:$0xff]
          %v581 = vld [vmem:[#allocation12 + $0x38] sm:$0xff]
          %v582 = vld [vmem:[#allocation12 + $0x40] sm:$0xff]
          %v583 = vld [vmem:[#allocation12 + $0x48] sm:$0xff]
          %v584 = vld [vmem:[#allocation12 + $0x50] sm:$0xff]
          %v585 = vld [vmem:[#allocation12 + $0x58] sm:$0xff]
          %v586 = vld [vmem:[#allocation12 + $0x60] sm:$0xff]
          %v587 = vld [vmem:[#allocation12 + $0x68] sm:$0xff]
          %v588 = vld [vmem:[#allocation12 + $0x70] sm:$0xff]
          %v589 = vld [vmem:[#allocation12 + $0x78] sm:$0xff]
          %590 = vmatpush.msra.mxu0 %v589
          %591 = vmatpush.msra.mxu0 %v588
          %592 = vmatpush.msra.mxu0 %v587
          %593 = vmatpush.msra.mxu0 %v586
          %594 = vmatpush.msra.mxu0 %v585
          %595 = vmatpush.msra.mxu0 %v584
          %596 = vmatpush.msra.mxu0 %v583
          %597 = vmatpush.msra.mxu0 %v582
          %598 = vmatpush.msra.mxu0 %v581
          %599 = vmatpush.msra.mxu0 %v580
          %600 = vmatpush.msra.mxu0 %v579
          %601 = vmatpush.msra.mxu0 %v578
          %602 = vmatpush.msra.mxu0 %v577
          %603 = vmatpush.msra.mxu0 %v576
          %604 = vmatpush.msra.mxu0 %v575
          %605 = vmatpush.msra.mxu0 %v574
          %606 = vmatmul.f32.gmra.mxu0 %v558
          %v607 = vpop.f32.mrf.mxu0
          %v608 = vadd.f32 0.0, %v607
          %609 = vmatmul.f32.gmra.mxu0 %v559
          %v610 = vpop.f32.mrf.mxu0
          %v611 = vadd.f32 0.0, %v610
          %612 = vmatmul.f32.gmra.mxu0 %v560
          %v613 = vpop.f32.mrf.mxu0
          %v614 = vadd.f32 0.0, %v613
          %615 = vmatmul.f32.gmra.mxu0 %v561
          %v616 = vpop.f32.mrf.mxu0
          %v617 = vadd.f32 0.0, %v616
          %618 = vmatmul.f32.gmra.mxu0 %v562
          %v619 = vpop.f32.mrf.mxu0
          %v620 = vadd.f32 0.0, %v619
          %621 = vmatmul.f32.gmra.mxu0 %v563
          %v622 = vpop.f32.mrf.mxu0
          %v623 = vadd.f32 0.0, %v622
          %624 = vmatmul.f32.gmra.mxu0 %v564
          %v625 = vpop.f32.mrf.mxu0
          %v626 = vadd.f32 0.0, %v625
          %627 = vmatmul.f32.gmra.mxu0 %v565
          %v628 = vpop.f32.mrf.mxu0
          %v629 = vadd.f32 0.0, %v628
          %630 = vmatmul.f32.gmra.mxu0 %v566
          %v631 = vpop.f32.mrf.mxu0
          %v632 = vadd.f32 0.0, %v631
          %633 = vmatmul.f32.gmra.mxu0 %v567
          %v634 = vpop.f32.mrf.mxu0
          %v635 = vadd.f32 0.0, %v634
          %636 = vmatmul.f32.gmra.mxu0 %v568
          %v637 = vpop.f32.mrf.mxu0
          %v638 = vadd.f32 0.0, %v637
          %639 = vmatmul.f32.gmra.mxu0 %v569
          %v640 = vpop.f32.mrf.mxu0
          %v641 = vadd.f32 0.0, %v640
          %642 = vmatmul.f32.gmra.mxu0 %v570
          %v643 = vpop.f32.mrf.mxu0
          %v644 = vadd.f32 0.0, %v643
          %645 = vmatmul.f32.gmra.mxu0 %v571
          %v646 = vpop.f32.mrf.mxu0
          %v647 = vadd.f32 0.0, %v646
          %648 = vmatmul.f32.gmra.mxu0 %v572
          %v649 = vpop.f32.mrf.mxu0
          %v650 = vadd.f32 0.0, %v649
          %651 = vmatmul.f32.gmra.mxu0 %v573
          %v652 = vpop.f32.mrf.mxu0
          %v653 = vadd.f32 0.0, %v652
          %654 = vdwg.mxu0
          %v655 = vld [vmem:[#allocation14] sm:$0xff]
          %v656 = vld [vmem:[#allocation14 + $0x8] sm:$0xff]
          %v657 = vld [vmem:[#allocation14 + $0x10] sm:$0xff]
          %v658 = vld [vmem:[#allocation14 + $0x18] sm:$0xff]
          %v659 = vld [vmem:[#allocation14 + $0x20] sm:$0xff]
          %v660 = vld [vmem:[#allocation14 + $0x28] sm:$0xff]
          %v661 = vld [vmem:[#allocation14 + $0x30] sm:$0xff]
          %v662 = vld [vmem:[#allocation14 + $0x38] sm:$0xff]
          %v663 = vld [vmem:[#allocation14 + $0x40] sm:$0xff]
          %v664 = vld [vmem:[#allocation14 + $0x48] sm:$0xff]
          %v665 = vld [vmem:[#allocation14 + $0x50] sm:$0xff]
          %v666 = vld [vmem:[#allocation14 + $0x58] sm:$0xff]
          %v667 = vld [vmem:[#allocation14 + $0x60] sm:$0xff]
          %v668 = vld [vmem:[#allocation14 + $0x68] sm:$0xff]
          %v669 = vld [vmem:[#allocation14 + $0x70] sm:$0xff]
          %v670 = vld [vmem:[#allocation14 + $0x78] sm:$0xff]
          %671 = vmatpush.msra.mxu0 %v670
          %672 = vmatpush.msra.mxu0 %v669
          %673 = vmatpush.msra.mxu0 %v668
          %674 = vmatpush.msra.mxu0 %v667
          %675 = vmatpush.msra.mxu0 %v666
          %676 = vmatpush.msra.mxu0 %v665
          %677 = vmatpush.msra.mxu0 %v664
          %678 = vmatpush.msra.mxu0 %v663
          %679 = vmatpush.msra.mxu0 %v662
          %680 = vmatpush.msra.mxu0 %v661
          %681 = vmatpush.msra.mxu0 %v660
          %682 = vmatpush.msra.mxu0 %v659
          %683 = vmatpush.msra.mxu0 %v658
          %684 = vmatpush.msra.mxu0 %v657
          %685 = vmatpush.msra.mxu0 %v656
          %686 = vmatpush.msra.mxu0 %v655
          %687 = vmatmul.f32.gmra.mxu0 %v558
          %v688 = vpop.f32.mrf.mxu0
          %v689 = vadd.f32 0.0, %v688
          %690 = vmatmul.f32.gmra.mxu0 %v559
          %v691 = vpop.f32.mrf.mxu0
          %v692 = vadd.f32 0.0, %v691
          %693 = vmatmul.f32.gmra.mxu0 %v560
          %v694 = vpop.f32.mrf.mxu0
          %v695 = vadd.f32 0.0, %v694
          %696 = vmatmul.f32.gmra.mxu0 %v561
          %v697 = vpop.f32.mrf.mxu0
          %v698 = vadd.f32 0.0, %v697
          %699 = vmatmul.f32.gmra.mxu0 %v562
          %v700 = vpop.f32.mrf.mxu0
          %v701 = vadd.f32 0.0, %v700
          %702 = vmatmul.f32.gmra.mxu0 %v563
          %v703 = vpop.f32.mrf.mxu0
          %v704 = vadd.f32 0.0, %v703
          %705 = vmatmul.f32.gmra.mxu0 %v564
          %v706 = vpop.f32.mrf.mxu0
          %v707 = vadd.f32 0.0, %v706
          %708 = vmatmul.f32.gmra.mxu0 %v565
          %v709 = vpop.f32.mrf.mxu0
          %v710 = vadd.f32 0.0, %v709
          %711 = vmatmul.f32.gmra.mxu0 %v566
          %v712 = vpop.f32.mrf.mxu0
          %v713 = vadd.f32 0.0, %v712
          %714 = vmatmul.f32.gmra.mxu0 %v567
          %v715 = vpop.f32.mrf.mxu0
          %v716 = vadd.f32 0.0, %v715
          %717 = vmatmul.f32.gmra.mxu0 %v568
          %v718 = vpop.f32.mrf.mxu0
          %v719 = vadd.f32 0.0, %v718
          %720 = vmatmul.f32.gmra.mxu0 %v569
          %v721 = vpop.f32.mrf.mxu0
          %v722 = vadd.f32 0.0, %v721
          %723 = vmatmul.f32.gmra.mxu0 %v570
          %v724 = vpop.f32.mrf.mxu0
          %v725 = vadd.f32 0.0, %v724
          %726 = vmatmul.f32.gmra.mxu0 %v571
          %v727 = vpop.f32.mrf.mxu0
          %v728 = vadd.f32 0.0, %v727
          %729 = vmatmul.f32.gmra.mxu0 %v572
          %v730 = vpop.f32.mrf.mxu0
          %v731 = vadd.f32 0.0, %v730
          %732 = vmatmul.f32.gmra.mxu0 %v573
          %v733 = vpop.f32.mrf.mxu0
          %v734 = vadd.f32 0.0, %v733
          %735 = vdwg.mxu0
          %v736 = vld [vmem:[#allocation2] sm:$0xff]
          %v737 = vld [vmem:[#allocation2 + $0x8] sm:$0xff]
          %v738 = vld [vmem:[#allocation2 + $0x10] sm:$0xff]
          %v739 = vld [vmem:[#allocation2 + $0x18] sm:$0xff]
          %v740 = vld [vmem:[#allocation2 + $0x20] sm:$0xff]
          %v741 = vld [vmem:[#allocation2 + $0x28] sm:$0xff]
          %v742 = vld [vmem:[#allocation2 + $0x30] sm:$0xff]
          %v743 = vld [vmem:[#allocation2 + $0x38] sm:$0xff]
          %v744 = vld [vmem:[#allocation2 + $0x40] sm:$0xff]
          %v745 = vld [vmem:[#allocation2 + $0x48] sm:$0xff]
          %v746 = vld [vmem:[#allocation2 + $0x50] sm:$0xff]
          %v747 = vld [vmem:[#allocation2 + $0x58] sm:$0xff]
          %v748 = vld [vmem:[#allocation2 + $0x60] sm:$0xff]
          %v749 = vld [vmem:[#allocation2 + $0x68] sm:$0xff]
          %v750 = vld [vmem:[#allocation2 + $0x70] sm:$0xff]
          %v751 = vld [vmem:[#allocation2 + $0x78] sm:$0xff]
          %752 = vmatpush.xpose.msra.mxu0 %v653
          %753 = vmatpush.xpose.msra.mxu0 %v650
          %754 = vmatpush.xpose.msra.mxu0 %v647
          %755 = vmatpush.xpose.msra.mxu0 %v644
          %756 = vmatpush.xpose.msra.mxu0 %v641
          %757 = vmatpush.xpose.msra.mxu0 %v638
          %758 = vmatpush.xpose.msra.mxu0 %v635
          %759 = vmatpush.xpose.msra.mxu0 %v632
          %760 = vmatpush.xpose.msra.mxu0 %v629
          %761 = vmatpush.xpose.msra.mxu0 %v626
          %762 = vmatpush.xpose.msra.mxu0 %v623
          %763 = vmatpush.xpose.msra.mxu0 %v620
          %764 = vmatpush.xpose.msra.mxu0 %v617
          %765 = vmatpush.xpose.msra.mxu0 %v614
          %766 = vmatpush.xpose.msra.mxu0 %v611
          %767 = vmatpush.xpose.msra.mxu0 %v608
          %768 = vmatmul.f32.gmra.mxu0 %v736
          %v769 = vpop.f32.mrf.mxu0
          %v770 = vadd.f32 0.0, %v769
          %771 = vmatmul.f32.gmra.mxu0 %v737
          %v772 = vpop.f32.mrf.mxu0
          %v773 = vadd.f32 0.0, %v772
          %774 = vmatmul.f32.gmra.mxu0 %v738
          %v775 = vpop.f32.mrf.mxu0
          %v776 = vadd.f32 0.0, %v775
          %777 = vmatmul.f32.gmra.mxu0 %v739
          %v778 = vpop.f32.mrf.mxu0
          %v779 = vadd.f32 0.0, %v778
          %780 = vmatmul.f32.gmra.mxu0 %v740
          %v781 = vpop.f32.mrf.mxu0
          %v782 = vadd.f32 0.0, %v781
          %783 = vmatmul.f32.gmra.mxu0 %v741
          %v784 = vpop.f32.mrf.mxu0
          %v785 = vadd.f32 0.0, %v784
          %786 = vmatmul.f32.gmra.mxu0 %v742
          %v787 = vpop.f32.mrf.mxu0
          %v788 = vadd.f32 0.0, %v787
          %789 = vmatmul.f32.gmra.mxu0 %v743
          %v790 = vpop.f32.mrf.mxu0
          %v791 = vadd.f32 0.0, %v790
          %792 = vmatmul.f32.gmra.mxu0 %v744
          %v793 = vpop.f32.mrf.mxu0
          %v794 = vadd.f32 0.0, %v793
          %795 = vmatmul.f32.gmra.mxu0 %v745
          %v796 = vpop.f32.mrf.mxu0
          %v797 = vadd.f32 0.0, %v796
          %798 = vmatmul.f32.gmra.mxu0 %v746
          %v799 = vpop.f32.mrf.mxu0
          %v800 = vadd.f32 0.0, %v799
          %801 = vmatmul.f32.gmra.mxu0 %v747
          %v802 = vpop.f32.mrf.mxu0
          %v803 = vadd.f32 0.0, %v802
          %804 = vmatmul.f32.gmra.mxu0 %v748
          %v805 = vpop.f32.mrf.mxu0
          %v806 = vadd.f32 0.0, %v805
          %807 = vmatmul.f32.gmra.mxu0 %v749
          %v808 = vpop.f32.mrf.mxu0
          %v809 = vadd.f32 0.0, %v808
          %810 = vmatmul.f32.gmra.mxu0 %v750
          %v811 = vpop.f32.mrf.mxu0
          %v812 = vadd.f32 0.0, %v811
          %813 = vmatmul.f32.gmra.mxu0 %v751
          %v814 = vpop.f32.mrf.mxu0
          %v815 = vadd.f32 0.0, %v814
          %816 = vdwg.mxu0
          %s817 = smul.u32 %s32, 128
          %v818 = vlaneseq
          %v819 = vshrl.u32 %v818, 7
          %v820 = vadd.s32 %v819, 8
          %v821 = vadd.s32 %v819, 16
          %v822 = vadd.s32 %v819, 24
          %v823 = vadd.s32 %v819, 32
          %v824 = vadd.s32 %v819, 40
          %v825 = vadd.s32 %v819, 48
          %v826 = vadd.s32 %v819, 56
          %v827 = vadd.s32 %v819, 64
          %v828 = vadd.s32 %v819, 72
          %v829 = vadd.s32 %v819, 80
          %v830 = vadd.s32 %v819, 88
          %v831 = vadd.s32 %v819, 96
          %v832 = vadd.s32 %v819, 104
          %v833 = vadd.s32 %v819, 112
          %v834 = vadd.s32 %v819, 120
          %v835 = vstv %s817
          %v836 = vadd.s32 %v835, %v819
          %v837 = vadd.s32 %v835, %v820
          %v838 = vadd.s32 %v835, %v821
          %v839 = vadd.s32 %v835, %v822
          %v840 = vadd.s32 %v835, %v823
          %v841 = vadd.s32 %v835, %v824
          %v842 = vadd.s32 %v835, %v825
          %v843 = vadd.s32 %v835, %v826
          %v844 = vadd.s32 %v835, %v827
          %v845 = vadd.s32 %v835, %v828
          %v846 = vadd.s32 %v835, %v829
          %v847 = vadd.s32 %v835, %v830
          %v848 = vadd.s32 %v835, %v831
          %v849 = vadd.s32 %v835, %v832
          %v850 = vadd.s32 %v835, %v833
          %v851 = vadd.s32 %v835, %v834
          %v852 = vlaneseq
          %v853 = vand.u32 %v852, 127
          %v854 = vstv %s553
          %v855 = vadd.s32 %v854, %v853
          %vm856 = vcmp.gt.s32.totalorder %v855, %v836
          %vm857 = vcmp.gt.s32.totalorder %v855, %v837
          %vm858 = vcmp.gt.s32.totalorder %v855, %v838
          %vm859 = vcmp.gt.s32.totalorder %v855, %v839
          %vm860 = vcmp.gt.s32.totalorder %v855, %v840
          %vm861 = vcmp.gt.s32.totalorder %v855, %v841
          %vm862 = vcmp.gt.s32.totalorder %v855, %v842
          %vm863 = vcmp.gt.s32.totalorder %v855, %v843
          %vm864 = vcmp.gt.s32.totalorder %v855, %v844
          %vm865 = vcmp.gt.s32.totalorder %v855, %v845
          %vm866 = vcmp.gt.s32.totalorder %v855, %v846
          %vm867 = vcmp.gt.s32.totalorder %v855, %v847
          %vm868 = vcmp.gt.s32.totalorder %v855, %v848
          %vm869 = vcmp.gt.s32.totalorder %v855, %v849
          %vm870 = vcmp.gt.s32.totalorder %v855, %v850
          %vm871 = vcmp.gt.s32.totalorder %v855, %v851
          %v872 = vsel %vm856, -inf, %v770
          %v873 = vsel %vm857, -inf, %v773
          %v874 = vsel %vm858, -inf, %v776
          %v875 = vsel %vm859, -inf, %v779
          %v876 = vsel %vm860, -inf, %v782
          %v877 = vsel %vm861, -inf, %v785
          %v878 = vsel %vm862, -inf, %v788
          %v879 = vsel %vm863, -inf, %v791
          %v880 = vsel %vm864, -inf, %v794
          %v881 = vsel %vm865, -inf, %v797
          %v882 = vsel %vm866, -inf, %v800
          %v883 = vsel %vm867, -inf, %v803
          %v884 = vsel %vm868, -inf, %v806
          %v885 = vsel %vm869, -inf, %v809
          %v886 = vsel %vm870, -inf, %v812
          %v887 = vsel %vm871, -inf, %v815
          %v888 = vld [vmem:[#allocation3] sm:$0xff]
          %v889 = vld [vmem:[#allocation3 + $0x8] sm:$0xff]
          %v890 = vld [vmem:[#allocation3 + $0x10] sm:$0xff]
          %v891 = vld [vmem:[#allocation3 + $0x18] sm:$0xff]
          %v892 = vld [vmem:[#allocation3 + $0x20] sm:$0xff]
          %v893 = vld [vmem:[#allocation3 + $0x28] sm:$0xff]
          %v894 = vld [vmem:[#allocation3 + $0x30] sm:$0xff]
          %v895 = vld [vmem:[#allocation3 + $0x38] sm:$0xff]
          %v896 = vld [vmem:[#allocation3 + $0x40] sm:$0xff]
          %v897 = vld [vmem:[#allocation3 + $0x48] sm:$0xff]
          %v898 = vld [vmem:[#allocation3 + $0x50] sm:$0xff]
          %v899 = vld [vmem:[#allocation3 + $0x58] sm:$0xff]
          %v900 = vld [vmem:[#allocation3 + $0x60] sm:$0xff]
          %v901 = vld [vmem:[#allocation3 + $0x68] sm:$0xff]
          %v902 = vld [vmem:[#allocation3 + $0x70] sm:$0xff]
          %v903 = vld [vmem:[#allocation3 + $0x78] sm:$0xff]
          %904 = vmax.xlane.f32.xlu0 %v872
          %v905 = vpop.xlane.xlu0 %904
          %906 = vmax.xlane.f32.xlu0 %v873
          %v907 = vpop.xlane.xlu0 %906
          %908 = vmax.xlane.f32.xlu0 %v874
          %v909 = vpop.xlane.xlu0 %908
          %910 = vmax.xlane.f32.xlu0 %v875
          %v911 = vpop.xlane.xlu0 %910
          %912 = vmax.xlane.f32.xlu0 %v876
          %v913 = vpop.xlane.xlu0 %912
          %914 = vmax.xlane.f32.xlu0 %v877
          %v915 = vpop.xlane.xlu0 %914
          %916 = vmax.xlane.f32.xlu0 %v878
          %v917 = vpop.xlane.xlu0 %916
          %918 = vmax.xlane.f32.xlu0 %v879
          %v919 = vpop.xlane.xlu0 %918
          %920 = vmax.xlane.f32.xlu0 %v880
          %v921 = vpop.xlane.xlu0 %920
          %922 = vmax.xlane.f32.xlu0 %v881
          %v923 = vpop.xlane.xlu0 %922
          %924 = vmax.xlane.f32.xlu0 %v882
          %v925 = vpop.xlane.xlu0 %924
          %926 = vmax.xlane.f32.xlu0 %v883
          %v927 = vpop.xlane.xlu0 %926
          %928 = vmax.xlane.f32.xlu0 %v884
          %v929 = vpop.xlane.xlu0 %928
          %930 = vmax.xlane.f32.xlu0 %v885
          %v931 = vpop.xlane.xlu0 %930
          %932 = vmax.xlane.f32.xlu0 %v886
          %v933 = vpop.xlane.xlu0 %932
          %934 = vmax.xlane.f32.xlu0 %v887
          %v935 = vpop.xlane.xlu0 %934
          %v936 = vmax.f32 %v888, %v905
          %v937 = vmax.f32 %v889, %v907
          %v938 = vmax.f32 %v890, %v909
          %v939 = vmax.f32 %v891, %v911
          %v940 = vmax.f32 %v892, %v913
          %v941 = vmax.f32 %v893, %v915
          %v942 = vmax.f32 %v894, %v917
          %v943 = vmax.f32 %v895, %v919
          %v944 = vmax.f32 %v896, %v921
          %v945 = vmax.f32 %v897, %v923
          %v946 = vmax.f32 %v898, %v925
          %v947 = vmax.f32 %v899, %v927
          %v948 = vmax.f32 %v900, %v929
          %v949 = vmax.f32 %v901, %v931
          %v950 = vmax.f32 %v902, %v933
          %v951 = vmax.f32 %v903, %v935
          %v952 = vsub.f32 %v888, %v936
          %v953 = vsub.f32 %v889, %v937
          %v954 = vsub.f32 %v890, %v938
          %v955 = vsub.f32 %v891, %v939
          %v956 = vsub.f32 %v892, %v940
          %v957 = vsub.f32 %v893, %v941
          %v958 = vsub.f32 %v894, %v942
          %v959 = vsub.f32 %v895, %v943
          %v960 = vsub.f32 %v896, %v944
          %v961 = vsub.f32 %v897, %v945
          %v962 = vsub.f32 %v898, %v946
          %v963 = vsub.f32 %v899, %v947
          %v964 = vsub.f32 %v900, %v948
          %v965 = vsub.f32 %v901, %v949
          %v966 = vsub.f32 %v902, %v950
          %v967 = vsub.f32 %v903, %v951
          %v968 = vmul.f32 %v952, 1.442695
          %v969 = vpow.pop %v968
          %v970 = vmul.f32 %v953, 1.442695
          %v971 = vpow.pop %v970
          %v972 = vmul.f32 %v954, 1.442695
          %v973 = vpow.pop %v972
          %v974 = vmul.f32 %v955, 1.442695
          %v975 = vpow.pop %v974
          %v976 = vmul.f32 %v956, 1.442695
          %v977 = vpow.pop %v976
          %v978 = vmul.f32 %v957, 1.442695
          %v979 = vpow.pop %v978
          %v980 = vmul.f32 %v958, 1.442695
          %v981 = vpow.pop %v980
          %v982 = vmul.f32 %v959, 1.442695
          %v983 = vpow.pop %v982
          %v984 = vmul.f32 %v960, 1.442695
          %v985 = vpow.pop %v984
          %v986 = vmul.f32 %v961, 1.442695
          %v987 = vpow.pop %v986
          %v988 = vmul.f32 %v962, 1.442695
          %v989 = vpow.pop %v988
          %v990 = vmul.f32 %v963, 1.442695
          %v991 = vpow.pop %v990
          %v992 = vmul.f32 %v964, 1.442695
          %v993 = vpow.pop %v992
          %v994 = vmul.f32 %v965, 1.442695
          %v995 = vpow.pop %v994
          %v996 = vmul.f32 %v966, 1.442695
          %v997 = vpow.pop %v996
          %v998 = vmul.f32 %v967, 1.442695
          %v999 = vpow.pop %v998
          %1001 = vset.pattern.permute.xlu0 0
          %1002 = vperm.xlu0 %1001, %v936
          %v1003 = vpop.permute.xlu0 %1002
          %1006 = vset.pattern.permute.xlu0 0
          %1007 = vperm.xlu0 %1006, %v937
          %v1008 = vpop.permute.xlu0 %1007
          %1011 = vset.pattern.permute.xlu0 0
          %1012 = vperm.xlu0 %1011, %v938
          %v1013 = vpop.permute.xlu0 %1012
          %1016 = vset.pattern.permute.xlu0 0
          %1017 = vperm.xlu0 %1016, %v939
          %v1018 = vpop.permute.xlu0 %1017
          %1021 = vset.pattern.permute.xlu0 0
          %1022 = vperm.xlu0 %1021, %v940
          %v1023 = vpop.permute.xlu0 %1022
          %1026 = vset.pattern.permute.xlu0 0
          %1027 = vperm.xlu0 %1026, %v941
          %v1028 = vpop.permute.xlu0 %1027
          %1031 = vset.pattern.permute.xlu0 0
          %1032 = vperm.xlu0 %1031, %v942
          %v1033 = vpop.permute.xlu0 %1032
          %1036 = vset.pattern.permute.xlu0 0
          %1037 = vperm.xlu0 %1036, %v943
          %v1038 = vpop.permute.xlu0 %1037
          %1041 = vset.pattern.permute.xlu0 0
          %1042 = vperm.xlu0 %1041, %v944
          %v1043 = vpop.permute.xlu0 %1042
          %1046 = vset.pattern.permute.xlu0 0
          %1047 = vperm.xlu0 %1046, %v945
          %v1048 = vpop.permute.xlu0 %1047
          %1051 = vset.pattern.permute.xlu0 0
          %1052 = vperm.xlu0 %1051, %v946
          %v1053 = vpop.permute.xlu0 %1052
          %1056 = vset.pattern.permute.xlu0 0
          %1057 = vperm.xlu0 %1056, %v947
          %v1058 = vpop.permute.xlu0 %1057
          %1061 = vset.pattern.permute.xlu0 0
          %1062 = vperm.xlu0 %1061, %v948
          %v1063 = vpop.permute.xlu0 %1062
          %1066 = vset.pattern.permute.xlu0 0
          %1067 = vperm.xlu0 %1066, %v949
          %v1068 = vpop.permute.xlu0 %1067
          %1071 = vset.pattern.permute.xlu0 0
          %1072 = vperm.xlu0 %1071, %v950
          %v1073 = vpop.permute.xlu0 %1072
          %1076 = vset.pattern.permute.xlu0 0
          %1077 = vperm.xlu0 %1076, %v951
          %v1078 = vpop.permute.xlu0 %1077
          %v1080 = vsub.f32 %v872, %v1003
          %v1081 = vsub.f32 %v873, %v1008
          %v1082 = vsub.f32 %v874, %v1013
          %v1083 = vsub.f32 %v875, %v1018
          %v1084 = vsub.f32 %v876, %v1023
          %v1085 = vsub.f32 %v877, %v1028
          %v1086 = vsub.f32 %v878, %v1033
          %v1087 = vsub.f32 %v879, %v1038
          %v1088 = vsub.f32 %v880, %v1043
          %v1089 = vsub.f32 %v881, %v1048
          %v1090 = vsub.f32 %v882, %v1053
          %v1091 = vsub.f32 %v883, %v1058
          %v1092 = vsub.f32 %v884, %v1063
          %v1093 = vsub.f32 %v885, %v1068
          %v1094 = vsub.f32 %v886, %v1073
          %v1095 = vsub.f32 %v887, %v1078
          %v1096 = vmul.f32 %v1080, 1.442695
          %v1097 = vpow.pop %v1096
          %v1098 = vmul.f32 %v1081, 1.442695
          %v1099 = vpow.pop %v1098
          %v1100 = vmul.f32 %v1082, 1.442695
          %v1101 = vpow.pop %v1100
          %v1102 = vmul.f32 %v1083, 1.442695
          %v1103 = vpow.pop %v1102
          %v1104 = vmul.f32 %v1084, 1.442695
          %v1105 = vpow.pop %v1104
          %v1106 = vmul.f32 %v1085, 1.442695
          %v1107 = vpow.pop %v1106
          %v1108 = vmul.f32 %v1086, 1.442695
          %v1109 = vpow.pop %v1108
          %v1110 = vmul.f32 %v1087, 1.442695
          %v1111 = vpow.pop %v1110
          %v1112 = vmul.f32 %v1088, 1.442695
          %v1113 = vpow.pop %v1112
          %v1114 = vmul.f32 %v1089, 1.442695
          %v1115 = vpow.pop %v1114
          %v1116 = vmul.f32 %v1090, 1.442695
          %v1117 = vpow.pop %v1116
          %v1118 = vmul.f32 %v1091, 1.442695
          %v1119 = vpow.pop %v1118
          %v1120 = vmul.f32 %v1092, 1.442695
          %v1121 = vpow.pop %v1120
          %v1122 = vmul.f32 %v1093, 1.442695
          %v1123 = vpow.pop %v1122
          %v1124 = vmul.f32 %v1094, 1.442695
          %v1125 = vpow.pop %v1124
          %v1126 = vmul.f32 %v1095, 1.442695
          %v1127 = vpow.pop %v1126
          %v1128 = vld [vmem:[#allocation4] sm:$0xff]
          %v1129 = vld [vmem:[#allocation4 + $0x8] sm:$0xff]
          %v1130 = vld [vmem:[#allocation4 + $0x10] sm:$0xff]
          %v1131 = vld [vmem:[#allocation4 + $0x18] sm:$0xff]
          %v1132 = vld [vmem:[#allocation4 + $0x20] sm:$0xff]
          %v1133 = vld [vmem:[#allocation4 + $0x28] sm:$0xff]
          %v1134 = vld [vmem:[#allocation4 + $0x30] sm:$0xff]
          %v1135 = vld [vmem:[#allocation4 + $0x38] sm:$0xff]
          %v1136 = vld [vmem:[#allocation4 + $0x40] sm:$0xff]
          %v1137 = vld [vmem:[#allocation4 + $0x48] sm:$0xff]
          %v1138 = vld [vmem:[#allocation4 + $0x50] sm:$0xff]
          %v1139 = vld [vmem:[#allocation4 + $0x58] sm:$0xff]
          %v1140 = vld [vmem:[#allocation4 + $0x60] sm:$0xff]
          %v1141 = vld [vmem:[#allocation4 + $0x68] sm:$0xff]
          %v1142 = vld [vmem:[#allocation4 + $0x70] sm:$0xff]
          %v1143 = vld [vmem:[#allocation4 + $0x78] sm:$0xff]
          %v1144 = vmul.f32 %v969, %v1128
          %v1145 = vmul.f32 %v971, %v1129
          %v1146 = vmul.f32 %v973, %v1130
          %v1147 = vmul.f32 %v975, %v1131
          %v1148 = vmul.f32 %v977, %v1132
          %v1149 = vmul.f32 %v979, %v1133
          %v1150 = vmul.f32 %v981, %v1134
          %v1151 = vmul.f32 %v983, %v1135
          %v1152 = vmul.f32 %v985, %v1136
          %v1153 = vmul.f32 %v987, %v1137
          %v1154 = vmul.f32 %v989, %v1138
          %v1155 = vmul.f32 %v991, %v1139
          %v1156 = vmul.f32 %v993, %v1140
          %v1157 = vmul.f32 %v995, %v1141
          %v1158 = vmul.f32 %v997, %v1142
          %v1159 = vmul.f32 %v999, %v1143
          %1160 = vadd.xlane.f32.xlu0 %v1097
          %v1161 = vpop.xlane.xlu0 %1160
          %1162 = vadd.xlane.f32.xlu0 %v1099
          %v1163 = vpop.xlane.xlu0 %1162
          %1164 = vadd.xlane.f32.xlu0 %v1101
          %v1165 = vpop.xlane.xlu0 %1164
          %1166 = vadd.xlane.f32.xlu0 %v1103
          %v1167 = vpop.xlane.xlu0 %1166
          %1168 = vadd.xlane.f32.xlu0 %v1105
          %v1169 = vpop.xlane.xlu0 %1168
          %1170 = vadd.xlane.f32.xlu0 %v1107
          %v1171 = vpop.xlane.xlu0 %1170
          %1172 = vadd.xlane.f32.xlu0 %v1109
          %v1173 = vpop.xlane.xlu0 %1172
          %1174 = vadd.xlane.f32.xlu0 %v1111
          %v1175 = vpop.xlane.xlu0 %1174
          %1176 = vadd.xlane.f32.xlu0 %v1113
          %v1177 = vpop.xlane.xlu0 %1176
          %1178 = vadd.xlane.f32.xlu0 %v1115
          %v1179 = vpop.xlane.xlu0 %1178
          %1180 = vadd.xlane.f32.xlu0 %v1117
          %v1181 = vpop.xlane.xlu0 %1180
          %1182 = vadd.xlane.f32.xlu0 %v1119
          %v1183 = vpop.xlane.xlu0 %1182
          %1184 = vadd.xlane.f32.xlu0 %v1121
          %v1185 = vpop.xlane.xlu0 %1184
          %1186 = vadd.xlane.f32.xlu0 %v1123
          %v1187 = vpop.xlane.xlu0 %1186
          %1188 = vadd.xlane.f32.xlu0 %v1125
          %v1189 = vpop.xlane.xlu0 %1188
          %1190 = vadd.xlane.f32.xlu0 %v1127
          %v1191 = vpop.xlane.xlu0 %1190
          %v1192 = vadd.f32 %v1144, %v1161
          %v1193 = vadd.f32 %v1145, %v1163
          %v1194 = vadd.f32 %v1146, %v1165
          %v1195 = vadd.f32 %v1147, %v1167
          %v1196 = vadd.f32 %v1148, %v1169
          %v1197 = vadd.f32 %v1149, %v1171
          %v1198 = vadd.f32 %v1150, %v1173
          %v1199 = vadd.f32 %v1151, %v1175
          %v1200 = vadd.f32 %v1152, %v1177
          %v1201 = vadd.f32 %v1153, %v1179
          %v1202 = vadd.f32 %v1154, %v1181
          %v1203 = vadd.f32 %v1155, %v1183
          %v1204 = vadd.f32 %v1156, %v1185
          %v1205 = vadd.f32 %v1157, %v1187
          %v1206 = vadd.f32 %v1158, %v1189
          %v1207 = vadd.f32 %v1159, %v1191
          %vm1208 = vcmask 7168
          %1209 = vst.msk [vmem:[#allocation4] sm:$0xff] %vm1208, %v1192
          %1210 = vst.msk [vmem:[#allocation4 + $0x8] sm:$0xff] %vm1208, %v1193
          %1211 = vst.msk [vmem:[#allocation4 + $0x10] sm:$0xff] %vm1208, %v1194
          %1212 = vst.msk [vmem:[#allocation4 + $0x18] sm:$0xff] %vm1208, %v1195
          %1213 = vst.msk [vmem:[#allocation4 + $0x20] sm:$0xff] %vm1208, %v1196
          %1214 = vst.msk [vmem:[#allocation4 + $0x28] sm:$0xff] %vm1208, %v1197
          %1215 = vst.msk [vmem:[#allocation4 + $0x30] sm:$0xff] %vm1208, %v1198
          %1216 = vst.msk [vmem:[#allocation4 + $0x38] sm:$0xff] %vm1208, %v1199
          %1217 = vst.msk [vmem:[#allocation4 + $0x40] sm:$0xff] %vm1208, %v1200
          %1218 = vst.msk [vmem:[#allocation4 + $0x48] sm:$0xff] %vm1208, %v1201
          %1219 = vst.msk [vmem:[#allocation4 + $0x50] sm:$0xff] %vm1208, %v1202
          %1220 = vst.msk [vmem:[#allocation4 + $0x58] sm:$0xff] %vm1208, %v1203
          %1221 = vst.msk [vmem:[#allocation4 + $0x60] sm:$0xff] %vm1208, %v1204
          %1222 = vst.msk [vmem:[#allocation4 + $0x68] sm:$0xff] %vm1208, %v1205
          %1223 = vst.msk [vmem:[#allocation4 + $0x70] sm:$0xff] %vm1208, %v1206
          %1224 = vst.msk [vmem:[#allocation4 + $0x78] sm:$0xff] %vm1208, %v1207
          %v1225 = vld [vmem:[#allocation5] sm:$0xff]
          %v1226 = vld [vmem:[#allocation5 + $0x8] sm:$0xff]
          %v1227 = vld [vmem:[#allocation5 + $0x10] sm:$0xff]
          %v1228 = vld [vmem:[#allocation5 + $0x18] sm:$0xff]
          %v1229 = vld [vmem:[#allocation5 + $0x20] sm:$0xff]
          %v1230 = vld [vmem:[#allocation5 + $0x28] sm:$0xff]
          %v1231 = vld [vmem:[#allocation5 + $0x30] sm:$0xff]
          %v1232 = vld [vmem:[#allocation5 + $0x38] sm:$0xff]
          %v1233 = vld [vmem:[#allocation5 + $0x40] sm:$0xff]
          %v1234 = vld [vmem:[#allocation5 + $0x48] sm:$0xff]
          %v1235 = vld [vmem:[#allocation5 + $0x50] sm:$0xff]
          %v1236 = vld [vmem:[#allocation5 + $0x58] sm:$0xff]
          %v1237 = vld [vmem:[#allocation5 + $0x60] sm:$0xff]
          %v1238 = vld [vmem:[#allocation5 + $0x68] sm:$0xff]
          %v1239 = vld [vmem:[#allocation5 + $0x70] sm:$0xff]
          %v1240 = vld [vmem:[#allocation5 + $0x78] sm:$0xff]
          %1242 = vset.pattern.permute.xlu0 0
          %1243 = vperm.xlu0 %1242, %v969
          %v1244 = vpop.permute.xlu0 %1243
          %1247 = vset.pattern.permute.xlu0 0
          %1248 = vperm.xlu0 %1247, %v971
          %v1249 = vpop.permute.xlu0 %1248
          %1252 = vset.pattern.permute.xlu0 0
          %1253 = vperm.xlu0 %1252, %v973
          %v1254 = vpop.permute.xlu0 %1253
          %1257 = vset.pattern.permute.xlu0 0
          %1258 = vperm.xlu0 %1257, %v975
          %v1259 = vpop.permute.xlu0 %1258
          %1262 = vset.pattern.permute.xlu0 0
          %1263 = vperm.xlu0 %1262, %v977
          %v1264 = vpop.permute.xlu0 %1263
          %1267 = vset.pattern.permute.xlu0 0
          %1268 = vperm.xlu0 %1267, %v979
          %v1269 = vpop.permute.xlu0 %1268
          %1272 = vset.pattern.permute.xlu0 0
          %1273 = vperm.xlu0 %1272, %v981
          %v1274 = vpop.permute.xlu0 %1273
          %1277 = vset.pattern.permute.xlu0 0
          %1278 = vperm.xlu0 %1277, %v983
          %v1279 = vpop.permute.xlu0 %1278
          %1282 = vset.pattern.permute.xlu0 0
          %1283 = vperm.xlu0 %1282, %v985
          %v1284 = vpop.permute.xlu0 %1283
          %1287 = vset.pattern.permute.xlu0 0
          %1288 = vperm.xlu0 %1287, %v987
          %v1289 = vpop.permute.xlu0 %1288
          %1292 = vset.pattern.permute.xlu0 0
          %1293 = vperm.xlu0 %1292, %v989
          %v1294 = vpop.permute.xlu0 %1293
          %1297 = vset.pattern.permute.xlu0 0
          %1298 = vperm.xlu0 %1297, %v991
          %v1299 = vpop.permute.xlu0 %1298
          %1302 = vset.pattern.permute.xlu0 0
          %1303 = vperm.xlu0 %1302, %v993
          %v1304 = vpop.permute.xlu0 %1303
          %1307 = vset.pattern.permute.xlu0 0
          %1308 = vperm.xlu0 %1307, %v995
          %v1309 = vpop.permute.xlu0 %1308
          %1312 = vset.pattern.permute.xlu0 0
          %1313 = vperm.xlu0 %1312, %v997
          %v1314 = vpop.permute.xlu0 %1313
          %1317 = vset.pattern.permute.xlu0 0
          %1318 = vperm.xlu0 %1317, %v999
          %v1319 = vpop.permute.xlu0 %1318
          %v1321 = vmul.f32 %v1244, %v1225
          %v1322 = vmul.f32 %v1249, %v1226
          %v1323 = vmul.f32 %v1254, %v1227
          %v1324 = vmul.f32 %v1259, %v1228
          %v1325 = vmul.f32 %v1264, %v1229
          %v1326 = vmul.f32 %v1269, %v1230
          %v1327 = vmul.f32 %v1274, %v1231
          %v1328 = vmul.f32 %v1279, %v1232
          %v1329 = vmul.f32 %v1284, %v1233
          %v1330 = vmul.f32 %v1289, %v1234
          %v1331 = vmul.f32 %v1294, %v1235
          %v1332 = vmul.f32 %v1299, %v1236
          %v1333 = vmul.f32 %v1304, %v1237
          %v1334 = vmul.f32 %v1309, %v1238
          %v1335 = vmul.f32 %v1314, %v1239
          %v1336 = vmul.f32 %v1319, %v1240
          %1337 = vmatpush.msra.mxu0 %v734
          %1338 = vmatpush.msra.mxu0 %v731
          %1339 = vmatpush.msra.mxu0 %v728
          %1340 = vmatpush.msra.mxu0 %v725
          %1341 = vmatpush.msra.mxu0 %v722
          %1342 = vmatpush.msra.mxu0 %v719
          %1343 = vmatpush.msra.mxu0 %v716
          %1344 = vmatpush.msra.mxu0 %v713
          %1345 = vmatpush.msra.mxu0 %v710
          %1346 = vmatpush.msra.mxu0 %v707
          %1347 = vmatpush.msra.mxu0 %v704
          %1348 = vmatpush.msra.mxu0 %v701
          %1349 = vmatpush.msra.mxu0 %v698
          %1350 = vmatpush.msra.mxu0 %v695
          %1351 = vmatpush.msra.mxu0 %v692
          %1352 = vmatpush.msra.mxu0 %v689
          %1353 = vmatmul.f32.gmra.mxu0 %v1097
          %v1354 = vpop.f32.mrf.mxu0
          %v1355 = vadd.f32 0.0, %v1354
          %1356 = vmatmul.f32.gmra.mxu0 %v1099
          %v1357 = vpop.f32.mrf.mxu0
          %v1358 = vadd.f32 0.0, %v1357
          %1359 = vmatmul.f32.gmra.mxu0 %v1101
          %v1360 = vpop.f32.mrf.mxu0
          %v1361 = vadd.f32 0.0, %v1360
          %1362 = vmatmul.f32.gmra.mxu0 %v1103
          %v1363 = vpop.f32.mrf.mxu0
          %v1364 = vadd.f32 0.0, %v1363
          %1365 = vmatmul.f32.gmra.mxu0 %v1105
          %v1366 = vpop.f32.mrf.mxu0
          %v1367 = vadd.f32 0.0, %v1366
          %1368 = vmatmul.f32.gmra.mxu0 %v1107
          %v1369 = vpop.f32.mrf.mxu0
          %v1370 = vadd.f32 0.0, %v1369
          %1371 = vmatmul.f32.gmra.mxu0 %v1109
          %v1372 = vpop.f32.mrf.mxu0
          %v1373 = vadd.f32 0.0, %v1372
          %1374 = vmatmul.f32.gmra.mxu0 %v1111
          %v1375 = vpop.f32.mrf.mxu0
          %v1376 = vadd.f32 0.0, %v1375
          %1377 = vmatmul.f32.gmra.mxu0 %v1113
          %v1378 = vpop.f32.mrf.mxu0
          %v1379 = vadd.f32 0.0, %v1378
          %1380 = vmatmul.f32.gmra.mxu0 %v1115
          %v1381 = vpop.f32.mrf.mxu0
          %v1382 = vadd.f32 0.0, %v1381
          %1383 = vmatmul.f32.gmra.mxu0 %v1117
          %v1384 = vpop.f32.mrf.mxu0
          %v1385 = vadd.f32 0.0, %v1384
          %1386 = vmatmul.f32.gmra.mxu0 %v1119
          %v1387 = vpop.f32.mrf.mxu0
          %v1388 = vadd.f32 0.0, %v1387
          %1389 = vmatmul.f32.gmra.mxu0 %v1121
          %v1390 = vpop.f32.mrf.mxu0
          %v1391 = vadd.f32 0.0, %v1390
          %1392 = vmatmul.f32.gmra.mxu0 %v1123
          %v1393 = vpop.f32.mrf.mxu0
          %v1394 = vadd.f32 0.0, %v1393
          %1395 = vmatmul.f32.gmra.mxu0 %v1125
          %v1396 = vpop.f32.mrf.mxu0
          %v1397 = vadd.f32 0.0, %v1396
          %1398 = vmatmul.f32.gmra.mxu0 %v1127
          %v1399 = vpop.f32.mrf.mxu0
          %v1400 = vadd.f32 0.0, %v1399
          %1401 = vdwg.mxu0
          %v1402 = vadd.f32 %v1321, %v1355
          %v1403 = vadd.f32 %v1322, %v1358
          %v1404 = vadd.f32 %v1323, %v1361
          %v1405 = vadd.f32 %v1324, %v1364
          %v1406 = vadd.f32 %v1325, %v1367
          %v1407 = vadd.f32 %v1326, %v1370
          %v1408 = vadd.f32 %v1327, %v1373
          %v1409 = vadd.f32 %v1328, %v1376
          %v1410 = vadd.f32 %v1329, %v1379
          %v1411 = vadd.f32 %v1330, %v1382
          %v1412 = vadd.f32 %v1331, %v1385
          %v1413 = vadd.f32 %v1332, %v1388
          %v1414 = vadd.f32 %v1333, %v1391
          %v1415 = vadd.f32 %v1334, %v1394
          %v1416 = vadd.f32 %v1335, %v1397
          %v1417 = vadd.f32 %v1336, %v1400
          %1418 = vst [vmem:[#allocation5] sm:$0xff] %v1402
          %1419 = vst [vmem:[#allocation5 + $0x8] sm:$0xff] %v1403
          %1420 = vst [vmem:[#allocation5 + $0x10] sm:$0xff] %v1404
          %1421 = vst [vmem:[#allocation5 + $0x18] sm:$0xff] %v1405
          %1422 = vst [vmem:[#allocation5 + $0x20] sm:$0xff] %v1406
          %1423 = vst [vmem:[#allocation5 + $0x28] sm:$0xff] %v1407
          %1424 = vst [vmem:[#allocation5 + $0x30] sm:$0xff] %v1408
          %1425 = vst [vmem:[#allocation5 + $0x38] sm:$0xff] %v1409
          %1426 = vst [vmem:[#allocation5 + $0x40] sm:$0xff] %v1410
          %1427 = vst [vmem:[#allocation5 + $0x48] sm:$0xff] %v1411
          %1428 = vst [vmem:[#allocation5 + $0x50] sm:$0xff] %v1412
          %1429 = vst [vmem:[#allocation5 + $0x58] sm:$0xff] %v1413
          %1430 = vst [vmem:[#allocation5 + $0x60] sm:$0xff] %v1414
          %1431 = vst [vmem:[#allocation5 + $0x68] sm:$0xff] %v1415
          %1432 = vst [vmem:[#allocation5 + $0x70] sm:$0xff] %v1416
          %1433 = vst [vmem:[#allocation5 + $0x78] sm:$0xff] %v1417
          %1434 = vst.msk [vmem:[#allocation3] sm:$0xff] %vm1208, %v936
          %1435 = vst.msk [vmem:[#allocation3 + $0x8] sm:$0xff] %vm1208, %v937
          %1436 = vst.msk [vmem:[#allocation3 + $0x10] sm:$0xff] %vm1208, %v938
          %1437 = vst.msk [vmem:[#allocation3 + $0x18] sm:$0xff] %vm1208, %v939
          %1438 = vst.msk [vmem:[#allocation3 + $0x20] sm:$0xff] %vm1208, %v940
          %1439 = vst.msk [vmem:[#allocation3 + $0x28] sm:$0xff] %vm1208, %v941
          %1440 = vst.msk [vmem:[#allocation3 + $0x30] sm:$0xff] %vm1208, %v942
          %1441 = vst.msk [vmem:[#allocation3 + $0x38] sm:$0xff] %vm1208, %v943
          %1442 = vst.msk [vmem:[#allocation3 + $0x40] sm:$0xff] %vm1208, %v944
          %1443 = vst.msk [vmem:[#allocation3 + $0x48] sm:$0xff] %vm1208, %v945
          %1444 = vst.msk [vmem:[#allocation3 + $0x50] sm:$0xff] %vm1208, %v946
          %1445 = vst.msk [vmem:[#allocation3 + $0x58] sm:$0xff] %vm1208, %v947
          %1446 = vst.msk [vmem:[#allocation3 + $0x60] sm:$0xff] %vm1208, %v948
          %1447 = vst.msk [vmem:[#allocation3 + $0x68] sm:$0xff] %vm1208, %v949
          %1448 = vst.msk [vmem:[#allocation3 + $0x70] sm:$0xff] %vm1208, %v950
          %1449 = vst.msk [vmem:[#allocation3 + $0x78] sm:$0xff] %vm1208, %v951
        $region68: #{tpu_custom_call.1} parent=39 // pred_fallthru
          _
        // Predicated region
        $region69: #{tpu_custom_call.1} parent=39 // pred_check
          %p1450 = pneg %p368
        $region70: #{tpu_custom_call.1} parent=39 // pred_check_branch
          %1452 = sbr.rel (%p1450) target = $region72
        $region71: #{tpu_custom_call.1} parent=39 // pred_region
          %v1453 = vld [vmem:[#allocation4] sm:$0xff]
          %v1454 = vld [vmem:[#allocation4 + $0x8] sm:$0xff]
          %v1455 = vld [vmem:[#allocation4 + $0x10] sm:$0xff]
          %v1456 = vld [vmem:[#allocation4 + $0x18] sm:$0xff]
          %v1457 = vld [vmem:[#allocation4 + $0x20] sm:$0xff]
          %v1458 = vld [vmem:[#allocation4 + $0x28] sm:$0xff]
          %v1459 = vld [vmem:[#allocation4 + $0x30] sm:$0xff]
          %v1460 = vld [vmem:[#allocation4 + $0x38] sm:$0xff]
          %v1461 = vld [vmem:[#allocation4 + $0x40] sm:$0xff]
          %v1462 = vld [vmem:[#allocation4 + $0x48] sm:$0xff]
          %v1463 = vld [vmem:[#allocation4 + $0x50] sm:$0xff]
          %v1464 = vld [vmem:[#allocation4 + $0x58] sm:$0xff]
          %v1465 = vld [vmem:[#allocation4 + $0x60] sm:$0xff]
          %v1466 = vld [vmem:[#allocation4 + $0x68] sm:$0xff]
          %v1467 = vld [vmem:[#allocation4 + $0x70] sm:$0xff]
          %v1468 = vld [vmem:[#allocation4 + $0x78] sm:$0xff]
          %v1469 = vrcp.pop %v1453
          %v1470 = vrcp.pop %v1454
          %v1471 = vrcp.pop %v1455
          %v1472 = vrcp.pop %v1456
          %v1473 = vrcp.pop %v1457
          %v1474 = vrcp.pop %v1458
          %v1475 = vrcp.pop %v1459
          %v1476 = vrcp.pop %v1460
          %v1477 = vrcp.pop %v1461
          %v1478 = vrcp.pop %v1462
          %v1479 = vrcp.pop %v1463
          %v1480 = vrcp.pop %v1464
          %v1481 = vrcp.pop %v1465
          %v1482 = vrcp.pop %v1466
          %v1483 = vrcp.pop %v1467
          %v1484 = vrcp.pop %v1468
          %v1485 = vld [vmem:[#allocation5] sm:$0xff]
          %v1486 = vld [vmem:[#allocation5 + $0x8] sm:$0xff]
          %v1487 = vld [vmem:[#allocation5 + $0x10] sm:$0xff]
          %v1488 = vld [vmem:[#allocation5 + $0x18] sm:$0xff]
          %v1489 = vld [vmem:[#allocation5 + $0x20] sm:$0xff]
          %v1490 = vld [vmem:[#allocation5 + $0x28] sm:$0xff]
          %v1491 = vld [vmem:[#allocation5 + $0x30] sm:$0xff]
          %v1492 = vld [vmem:[#allocation5 + $0x38] sm:$0xff]
          %v1493 = vld [vmem:[#allocation5 + $0x40] sm:$0xff]
          %v1494 = vld [vmem:[#allocation5 + $0x48] sm:$0xff]
          %v1495 = vld [vmem:[#allocation5 + $0x50] sm:$0xff]
          %v1496 = vld [vmem:[#allocation5 + $0x58] sm:$0xff]
          %v1497 = vld [vmem:[#allocation5 + $0x60] sm:$0xff]
          %v1498 = vld [vmem:[#allocation5 + $0x68] sm:$0xff]
          %v1499 = vld [vmem:[#allocation5 + $0x70] sm:$0xff]
          %v1500 = vld [vmem:[#allocation5 + $0x78] sm:$0xff]
          %1502 = vset.pattern.permute.xlu0 0
          %1503 = vperm.xlu0 %1502, %v1469
          %v1504 = vpop.permute.xlu0 %1503
          %1507 = vset.pattern.permute.xlu0 0
          %1508 = vperm.xlu0 %1507, %v1470
          %v1509 = vpop.permute.xlu0 %1508
          %1512 = vset.pattern.permute.xlu0 0
          %1513 = vperm.xlu0 %1512, %v1471
          %v1514 = vpop.permute.xlu0 %1513
          %1517 = vset.pattern.permute.xlu0 0
          %1518 = vperm.xlu0 %1517, %v1472
          %v1519 = vpop.permute.xlu0 %1518
          %1522 = vset.pattern.permute.xlu0 0
          %1523 = vperm.xlu0 %1522, %v1473
          %v1524 = vpop.permute.xlu0 %1523
          %1527 = vset.pattern.permute.xlu0 0
          %1528 = vperm.xlu0 %1527, %v1474
          %v1529 = vpop.permute.xlu0 %1528
          %1532 = vset.pattern.permute.xlu0 0
          %1533 = vperm.xlu0 %1532, %v1475
          %v1534 = vpop.permute.xlu0 %1533
          %1537 = vset.pattern.permute.xlu0 0
          %1538 = vperm.xlu0 %1537, %v1476
          %v1539 = vpop.permute.xlu0 %1538
          %1542 = vset.pattern.permute.xlu0 0
          %1543 = vperm.xlu0 %1542, %v1477
          %v1544 = vpop.permute.xlu0 %1543
          %1547 = vset.pattern.permute.xlu0 0
          %1548 = vperm.xlu0 %1547, %v1478
          %v1549 = vpop.permute.xlu0 %1548
          %1552 = vset.pattern.permute.xlu0 0
          %1553 = vperm.xlu0 %1552, %v1479
          %v1554 = vpop.permute.xlu0 %1553
          %1557 = vset.pattern.permute.xlu0 0
          %1558 = vperm.xlu0 %1557, %v1480
          %v1559 = vpop.permute.xlu0 %1558
          %1562 = vset.pattern.permute.xlu0 0
          %1563 = vperm.xlu0 %1562, %v1481
          %v1564 = vpop.permute.xlu0 %1563
          %1567 = vset.pattern.permute.xlu0 0
          %1568 = vperm.xlu0 %1567, %v1482
          %v1569 = vpop.permute.xlu0 %1568
          %1572 = vset.pattern.permute.xlu0 0
          %1573 = vperm.xlu0 %1572, %v1483
          %v1574 = vpop.permute.xlu0 %1573
          %1577 = vset.pattern.permute.xlu0 0
          %1578 = vperm.xlu0 %1577, %v1484
          %v1579 = vpop.permute.xlu0 %1578
          %v1581 = vmul.f32 %v1485, %v1504
          %v1582 = vmul.f32 %v1486, %v1509
          %v1583 = vmul.f32 %v1487, %v1514
          %v1584 = vmul.f32 %v1488, %v1519
          %v1585 = vmul.f32 %v1489, %v1524
          %v1586 = vmul.f32 %v1490, %v1529
          %v1587 = vmul.f32 %v1491, %v1534
          %v1588 = vmul.f32 %v1492, %v1539
          %v1589 = vmul.f32 %v1493, %v1544
          %v1590 = vmul.f32 %v1494, %v1549
          %v1591 = vmul.f32 %v1495, %v1554
          %v1592 = vmul.f32 %v1496, %v1559
          %v1593 = vmul.f32 %v1497, %v1564
          %v1594 = vmul.f32 %v1498, %v1569
          %v1595 = vmul.f32 %v1499, %v1574
          %v1596 = vmul.f32 %v1500, %v1579
          %1597 = vst [vmem:[%s364] sm:$0xff] %v1581
          %1598 = vst [vmem:[%s364 + $0x8] sm:$0xff] %v1582
          %1599 = vst [vmem:[%s364 + $0x10] sm:$0xff] %v1583
          %1600 = vst [vmem:[%s364 + $0x18] sm:$0xff] %v1584
          %1601 = vst [vmem:[%s364 + $0x20] sm:$0xff] %v1585
          %1602 = vst [vmem:[%s364 + $0x28] sm:$0xff] %v1586
          %1603 = vst [vmem:[%s364 + $0x30] sm:$0xff] %v1587
          %1604 = vst [vmem:[%s364 + $0x38] sm:$0xff] %v1588
          %1605 = vst [vmem:[%s364 + $0x40] sm:$0xff] %v1589
          %1606 = vst [vmem:[%s364 + $0x48] sm:$0xff] %v1590
          %1607 = vst [vmem:[%s364 + $0x50] sm:$0xff] %v1591
          %1608 = vst [vmem:[%s364 + $0x58] sm:$0xff] %v1592
          %1609 = vst [vmem:[%s364 + $0x60] sm:$0xff] %v1593
          %1610 = vst [vmem:[%s364 + $0x68] sm:$0xff] %v1594
          %1611 = vst [vmem:[%s364 + $0x70] sm:$0xff] %v1595
          %1612 = vst [vmem:[%s364 + $0x78] sm:$0xff] %v1596
        $region72: #{tpu_custom_call.1} parent=39 // pred_fallthru
          _
        %s1613 = sand.u32 %s174, 1
        %s1614 = scalar_lea.sflag [#allocation8], %s1613
        %s1615 = sand.u32 %s174, 1
        %s1616 = smul.addr %s1615, 128
        %s1617 = scalar_lea.vmem [#allocation15], %s1616
        // Predicated region
        $region73: #{tpu_custom_call.1} parent=39 // pred_check
          %p1618 = pneg %p184
        $region74: #{tpu_custom_call.1} parent=39 // pred_check_branch
          %1620 = sbr.rel (%p1618) target = $region76
        $region75: #{tpu_custom_call.1} parent=39 // pred_region
          %s1621 = smul.u32 16, %s32
          %1623 = vsyncadd %s1614, 0
          %s1624 = smul.addr %s31, 16
          %s1625 = sadd.s32 %s1621, %s1624
          %s1626 = smul.addr %s1625, 8
          %s1627 = scalar_lea.hbm %s5, %s1626
          %s1628 = sshll.u32 %s1617, 4
          %s1629 = int_to_ptr.vmem [resolvable:$true] %s1628
          %s1630 = sshll.u32 %s1627, 4
          %s1631 = int_to_ptr.hbm [resolvable:$true] %s1630
          %1636 = dma.vmem_to_hbm [thread:$0]  %s1629, 2048, %s1631, %s1614, 128, 128, 8
        $region76: #{tpu_custom_call.1} parent=39 // pred_fallthru
          _
      $region40: #{tpu_custom_call.1} parent=5 // pred_fallthru
        _
      %p1637 = scmp.le.s32.totalorder 2, %s21
      // Predicated region
      $region77: #{tpu_custom_call.1} parent=5 // pred_check
        %p1638 = pneg %p1637
      $region78: #{tpu_custom_call.1} parent=5 // pred_check_branch
        %1640 = sbr.rel (%p1638) target = $region80
      $region79: #{tpu_custom_call.1} parent=5 // pred_region
        %s1641 = ssub.s32 %s21, 2
        // Predicated region
        $region81: #{tpu_custom_call.1} parent=79 // pred_check
          %p1642 = pneg %p190
        $region82: #{tpu_custom_call.1} parent=79 // pred_check_branch
          %1644 = sbr.rel (%p1642) target = $region84
        $region83: #{tpu_custom_call.1} parent=79 // pred_region
          %s1645 = sand.u32 %s175, 1
          %s1646 = scalar_lea.sflag [#allocation8], %s1645
          %s1647 = sand.u32 %s175, 1
          %s1648 = smul.addr %s1647, 128
          %s1649 = scalar_lea.vmem [#allocation15], %s1648
          %1651 = dma.done %s1646, 2048
        $region84: #{tpu_custom_call.1} parent=79 // pred_fallthru
          _
      $region80: #{tpu_custom_call.1} parent=5 // pred_fallthru
        _
    $region6: #{tpu_custom_call.1} parent=1 // loop_footer
      %s25 = sadd.s32 1, %s21
    $region7: #{tpu_custom_call.1} parent=1 // loop_footer_branch
      %20 = sbr.rel target = $region3
    $region8: #{tpu_custom_call.1} parent=1 // loop_exit
      _
    %1652 = vsyncpa [#allocation7], 1
    %s1653 = scalar_lea.sflag [#allocation7], 1
    %1654 = vsyncpa %s1653, 1
    %1655 = vsyncpa [#allocation10], 1
    %s1656 = scalar_lea.sflag [#allocation10], 1
    %1657 = vsyncpa %s1656, 1
    %1658 = vsyncpa [#allocation13], 1
    %1659 = vsyncpa [#allocation8], 1
    %s1660 = scalar_lea.sflag [#allocation8], 1
    %1661 = vsyncpa %s1660, 1

</llo_original>
